<compile_context>
chip_gen: v7x
topology: tpu7x:2x2x1
jax: 0.10.0
libtpu: 0.0.40
codegen_flags: <defaults>
</compile_context>

<pallas_src>
import functools

import jax
import jax.numpy as jnp
from jax import lax
from jax.experimental import pallas as pl
from jax.experimental.pallas import tpu as pltpu


def prnet_kernel(x_ref, wih_ref, bih_ref, whh_ref, bhh_ref,
                 wq_ref, bq_ref, wkv_ref, bkv_ref,
                 ow_ref, ob_ref, cw_ref, cb_ref,
                 sel_ref, selt_ref,
                 o_ref,
                 gate_ref,
                 *, hidden_size, num_heads):
    T, B, D = x_ref.shape
    H = hidden_size
    NH = num_heads
    dh = H // NH
    f32 = jnp.float32

    def mm(a, w):
        # MXU matmul with f32 accumulation; casts the activation to the weight dtype
        # (bf16 operands when mxu_dtype=bf16 is selected in the wrapper).
        return jnp.dot(a.astype(w.dtype), w, preferred_element_type=f32)

    # ---------------- GRU input projections (fused, hoisted out of recurrence) ----
    # One (T*B, D) @ (D, 3H) matmul, one bias add, one scratch write.
    x_flat = x_ref[...].reshape(T * B, D)
    gate_ref[...] = (mm(x_flat, wih_ref[...]) + bih_ref[...]).reshape(T, B, 3 * H)

    # ---------------- GRU recurrence (PyTorch gate order r, z, n) -----------------
    whh = whh_ref[...]                                          # (H, 3H) fused r|z|n
    bhh = jnp.broadcast_to(bhh_ref[...], (B, 3 * H))            # hoisted broadcast

    def gru_step(t, h):
        gi = gate_ref[t]                                        # (B, 3H) input proj
        gh = mm(h, whh) + bhh                                   # ONE fused dot / step
        r = jax.nn.sigmoid(gi[:, :H] + gh[:, :H])
        z = jax.nn.sigmoid(gi[:, H:2 * H] + gh[:, H:2 * H])
        n = jnp.tanh(gi[:, 2 * H:] + r * gh[:, 2 * H:])
        h_new = (1.0 - z) * n + z * h
        # gate rows for step t are dead now: reuse the r-gate slot (lanes [0, H))
        # as the hidden-sequence store so no separate hseq buffer is needed.
        gate_ref[t, :, :H] = h_new
        return h_new

    # Full unroll only when per-step live data is small; else partial unroll.
    full_unroll = (T <= 8) and (B * 3 * H <= 8 * 1024)
    h_last = lax.fori_loop(0, T, gru_step, jnp.zeros((B, H), f32),
                           unroll=(True if full_unroll else 2))

    # ---------------- Multi-head self attention (query = last timestep) -----------
    hs_flat = gate_ref[:, :, :H].reshape(T * B, H)              # hidden seq, time-major

    scale = 1.0 / (float(dh) ** 0.5)
    qp = (mm(h_last, wq_ref[...]) + bq_ref[...]) * scale        # (B, H)
    kv = (mm(hs_flat, wkv_ref[...]) + bkv_ref[...]).reshape(T, B, 2 * H)
    kp = kv[:, :, :H]                                           # (T, B, H)
    vp = kv[:, :, H:]                                           # (T, B, H)

    # Block-diagonal head selectors (precomputed constants): lane-dense matmuls
    # instead of per-head slicing / concatenation.
    e = qp[None, :, :] * kp                                     # (T, B, H)
    s = mm(e.reshape(T * B, H), sel_ref[...]).reshape(T, B, NH)
    s_max = jnp.max(s, axis=0, keepdims=True)
    p = jnp.exp(s - s_max)
    denom = jnp.sum(p, axis=0, keepdims=True)
    p = p / denom                                               # exact divide (parity)

    p_full = mm(p.reshape(T * B, NH), selt_ref[...]).reshape(T, B, H)
    ctx = jnp.sum(p_full * vp, axis=0)                          # (B, H)

    attn = mm(ctx, ow_ref[...]) + ob_ref[...]                   # (B, H)

    # ---------------- Classifier + softmax (lane-padded to 128 outputs) -----------
    # Padded lanes have zero weight columns and -1e30 bias -> exp underflows to 0,
    # so the softmax over 128 lanes equals the softmax over the 3 real classes.
    logits = mm(attn, cw_ref[...]) + cb_ref[...]                # (B, 128)
    logits = logits - jnp.max(logits, axis=-1, keepdims=True)
    ez = jnp.exp(logits)
    o_ref[...] = ez / jnp.sum(ez, axis=-1, keepdims=True)


def prnet_forward(x, params, num_heads, *, mxu_dtype=jnp.float32):
    """x: (B, T, D) float32 -> (B, 3) float32 softmax probabilities."""
    B, T, D = x.shape
    H = params['w_hh'].shape[1]
    NH = num_heads
    assert H % NH == 0, "hidden_size must be divisible by num_heads"
    f32 = jnp.float32
    CPAD = 128                                                  # lane-dense classifier

    # ---- batch padding / block size -------------------------------------------
    B_BLK_MAX = 128          # raise toward 256 on v6e/v7x for large batches
    B_pad = max(8, ((B + 7) // 8) * 8)
    B_BLK = min(B_pad, B_BLK_MAX)
    B_pad = ((B_pad + B_BLK - 1) // B_BLK) * B_BLK

    x_p = jnp.pad(x.astype(f32), ((0, B_pad - B), (0, 0), (0, 0)))
    # TODO(synk): for large T, read (B_BLK, T, D) blocks straight from batch-major x
    # to avoid this extra HBM pass; negligible at these toy shapes.
    x_tm = jnp.transpose(x_p, (1, 0, 2))                        # (T, B_pad, D)

    # ---- weight prep (all transposes / fusions are free wrapper plumbing) ------
    wih = params['w_ih'].T.astype(mxu_dtype)                    # (D, 3H)  cols r|z|n
    whh = params['w_hh'].T.astype(mxu_dtype)                    # (H, 3H)  cols r|z|n
    bih = params['b_ih'].reshape(1, 3 * H).astype(f32)
    bhh = params['b_hh'].reshape(1, 3 * H).astype(f32)

    inw = params['in_proj_w']                                   # (3H, H) rows q|k|v
    inb = params['in_proj_b'].reshape(1, 3 * H)
    wq = inw[:H].T.astype(mxu_dtype)                            # (H, H)
    wkv = inw[H:].T.astype(mxu_dtype)                           # (H, 2H) cols k|v
    bq = inb[:, :H].astype(f32)
    bkv = inb[:, H:].astype(f32)
    ow = params['out_proj_w'].T.astype(mxu_dtype)               # (H, H)
    ob = params['out_proj_b'].astype(f32)                       # (1, H)

    cw = jnp.zeros((H, CPAD), f32).at[:, :3].set(params['cls_w'].T).astype(mxu_dtype)
    cb = jnp.full((1, CPAD), -1e30, f32).at[:, :3].set(params['cls_b'])

    # Head-selector constants: sel[d, n] = 1 iff feature d belongs to head n.
    dh = H // NH
    head_ids = jnp.arange(H) // dh
    sel = (head_ids[:, None] == jnp.arange(NH)[None, :]).astype(mxu_dtype)   # (H, NH)
    sel_t = sel.T                                                            # (NH, H)

    # ---- explicit VMEM budget ---------------------------------------------------
    itm = jnp.dtype(mxu_dtype).itemsize
    weight_bytes = itm * (D * 3 * H + H * 3 * H + H * H + H * 2 * H + H * H
                          + H * CPAD + 2 * NH * H)
    bias_bytes = 4 * (3 * H + 3 * H + H + 2 * H + H + CPAD)
    scratch_bytes = 4 * T * B_BLK * 3 * H
    io_bytes = 2 * 4 * T * B_BLK * D + 2 * 4 * B_BLK * CPAD
    vmem_limit = int(min(max(2 * (weight_bytes + bias_bytes + scratch_bytes + io_bytes),
                             16 * 2**20), 64 * 2**20))

    kernel = functools.partial(prnet_kernel, hidden_size=H, num_heads=NH)
    vmem = pl.BlockSpec(memory_space=pltpu.MemorySpace.VMEM)

    y = pl.pallas_call(
        kernel,
        out_shape=jax.ShapeDtypeStruct((B_pad, CPAD), f32),
        grid=(B_pad // B_BLK,),
        in_specs=[pl.BlockSpec((T, B_BLK, D), lambda b: (0, b, 0))] + [vmem] * 14,
        out_specs=pl.BlockSpec((B_BLK, CPAD), lambda b: (b, 0)),
        scratch_shapes=[
            pltpu.VMEM((T, B_BLK, 3 * H), f32),    # fused gates; r-slot reused as hseq
        ],
        compiler_params=pltpu.CompilerParams(
            dimension_semantics=("parallel",),      # batch blocks across TensorCores
            vmem_limit_bytes=vmem_limit),
    )(x_tm, wih, bih, whh, bhh, wq, bq, wkv, bkv, ow, ob, cw, cb, sel, sel_t)

    return y[:B, :3]


def init_params(key, input_size, hidden_size):
    """Deterministic parameter init matching PyTorch shapes (gate order r, z, n)."""
    H, D = hidden_size, input_size
    ks = jax.random.split(key, 11)
    u = lambda k, shape, s: jax.random.uniform(k, shape, jnp.float32, -s, s)
    s_gru = 1.0 / (H ** 0.5)
    s_lin = 1.0 / (H ** 0.5)
    return {
        # nn.GRU(input_size, hidden_size)
        'w_ih': u(ks[0], (3 * H, D), s_gru),
        'w_hh': u(ks[1], (3 * H, H), s_gru),
        'b_ih': u(ks[2], (1, 3 * H), s_gru),
        'b_hh': u(ks[3], (1, 3 * H), s_gru),
        # nn.MultiheadAttention(hidden_size, num_heads)
        'in_proj_w': u(ks[4], (3 * H, H), s_lin),
        'in_proj_b': u(ks[5], (1, 3 * H), s_lin),
        'out_proj_w': u(ks[6], (H, H), s_lin),
        'out_proj_b': u(ks[7], (1, H), s_lin),
        # nn.Linear(hidden_size, 3)
        'cls_w': u(ks[8], (3, H), s_lin),
        'cls_b': u(ks[9], (1, 3), s_lin),
    }


if __name__ == "__main__":
    B, T, D, H, NH = 2, 8, 4, 32, 4

    root = jax.random.PRNGKey(0)
    kx, kp = jax.random.split(root)
    x = jax.random.normal(kx, (B, T, D), jnp.float32)
    params = init_params(kp, D, H)

    y = prnet_forward(x, params, NH)          # f32 MXU operands (PyTorch parity)
    y = jax.block_until_ready(y)

    assert y.shape == (B, 3)
    assert bool(jnp.all(jnp.isfinite(y)))
    assert bool(jnp.allclose(jnp.sum(y, axis=-1), 1.0, atol=1e-5))
    print("KERNEL_OK")
</pallas_src>

<mosaic_0001>
module attributes {stable_mosaic.version = 11 : i64} {
  func.func @prnet_kernel(%arg0: i32, %arg1: memref<8x8x4xf32, #tpu.memory_space<vmem>>, %arg2: memref<4x96xf32, #tpu.memory_space<vmem>>, %arg3: memref<1x96xf32, #tpu.memory_space<vmem>>, %arg4: memref<32x96xf32, #tpu.memory_space<vmem>>, %arg5: memref<1x96xf32, #tpu.memory_space<vmem>>, %arg6: memref<32x32xf32, #tpu.memory_space<vmem>>, %arg7: memref<1x32xf32, #tpu.memory_space<vmem>>, %arg8: memref<32x64xf32, #tpu.memory_space<vmem>>, %arg9: memref<1x64xf32, #tpu.memory_space<vmem>>, %arg10: memref<32x32xf32, #tpu.memory_space<vmem>>, %arg11: memref<1x32xf32, #tpu.memory_space<vmem>>, %arg12: memref<32x128xf32, #tpu.memory_space<vmem>>, %arg13: memref<1x128xf32, #tpu.memory_space<vmem>>, %arg14: memref<32x4xf32, #tpu.memory_space<vmem>>, %arg15: memref<4x32xf32, #tpu.memory_space<vmem>>, %arg16: memref<8x128xf32, #tpu.memory_space<vmem>>, %arg17: memref<8x8x96xf32, #tpu.memory_space<vmem>>) attributes {dimension_semantics = [#tpu.dimension_semantics<parallel>], iteration_bounds = array<i64: 1>, scalar_prefetch = 0 : i64, scratch_operands = 1 : i64, tpu.core_type = #tpu.core_type<tc>, window_params = [{transform_indices = @transform_0, window_bounds = array<i64: 8, 8, 4>}, {pipeline_mode = #tpu.pipeline_mode<synchronous>, transform_indices = @transform_1, window_bounds = array<i64: 4, 96>}, {pipeline_mode = #tpu.pipeline_mode<synchronous>, transform_indices = @transform_2, window_bounds = array<i64: 1, 96>}, {pipeline_mode = #tpu.pipeline_mode<synchronous>, transform_indices = @transform_3, window_bounds = array<i64: 32, 96>}, {pipeline_mode = #tpu.pipeline_mode<synchronous>, transform_indices = @transform_4, window_bounds = array<i64: 1, 96>}, {pipeline_mode = #tpu.pipeline_mode<synchronous>, transform_indices = @transform_5, window_bounds = array<i64: 32, 32>}, {pipeline_mode = #tpu.pipeline_mode<synchronous>, transform_indices = @transform_6, window_bounds = array<i64: 1, 32>}, {pipeline_mode = #tpu.pipeline_mode<synchronous>, transform_indices = @transform_7, window_bounds = array<i64: 32, 64>}, {pipeline_mode = #tpu.pipeline_mode<synchronous>, transform_indices = @transform_8, window_bounds = array<i64: 1, 64>}, {pipeline_mode = #tpu.pipeline_mode<synchronous>, transform_indices = @transform_9, window_bounds = array<i64: 32, 32>}, {pipeline_mode = #tpu.pipeline_mode<synchronous>, transform_indices = @transform_10, window_bounds = array<i64: 1, 32>}, {pipeline_mode = #tpu.pipeline_mode<synchronous>, transform_indices = @transform_11, window_bounds = array<i64: 32, 128>}, {pipeline_mode = #tpu.pipeline_mode<synchronous>, transform_indices = @transform_12, window_bounds = array<i64: 1, 128>}, {pipeline_mode = #tpu.pipeline_mode<synchronous>, transform_indices = @transform_13, window_bounds = array<i64: 32, 4>}, {pipeline_mode = #tpu.pipeline_mode<synchronous>, transform_indices = @transform_14, window_bounds = array<i64: 4, 32>}, {transform_indices = @transform_15, window_bounds = array<i64: 8, 128>}]} {
    %c0 = arith.constant 0 : index
    %c0_0 = arith.constant 0 : index
    %c0_1 = arith.constant 0 : index
    %0 = vector.load %arg1[%c0, %c0_0, %c0_1] : memref<8x8x4xf32, #tpu.memory_space<vmem>>, vector<8x8x4xf32>
    %1 = vector.shape_cast %0 : vector<8x8x4xf32> to vector<64x4xf32>
    %c0_2 = arith.constant 0 : index
    %c0_3 = arith.constant 0 : index
    %2 = vector.load %arg2[%c0_2, %c0_3] : memref<4x96xf32, #tpu.memory_space<vmem>>, vector<4x96xf32>
    %cst = arith.constant dense<0.000000e+00> : vector<64x96xf32>
    %3 = tpu.matmul %1, %2, %cst {dimension_numbers = #tpu.dot_dimension_numbers<[1], [0], [0], [1], [0, 0, 1, 1], [], []>} : vector<64x4xf32>, vector<4x96xf32>, vector<64x96xf32> -> vector<64x96xf32>
    %c0_4 = arith.constant 0 : index
    %c0_5 = arith.constant 0 : index
    %4 = vector.load %arg3[%c0_4, %c0_5] : memref<1x96xf32, #tpu.memory_space<vmem>>, vector<1x96xf32>
    %5 = vector.broadcast %4 : vector<1x96xf32> to vector<64x96xf32>
    %6 = arith.addf %3, %5 : vector<64x96xf32>
    %7 = vector.shape_cast %6 : vector<64x96xf32> to vector<8x8x96xf32>
    %c0_6 = arith.constant 0 : index
    %c0_7 = arith.constant 0 : index
    %c0_8 = arith.constant 0 : index
    %8 = vector.load %arg17[%c0_6, %c0_7, %c0_8] : memref<8x8x96xf32, #tpu.memory_space<vmem>>, vector<8x8x96xf32>
    tpu.vector_store %arg17[%c0_6, %c0_7, %c0_8], %7 {strides = array<i32>} : memref<8x8x96xf32, #tpu.memory_space<vmem>>, vector<8x8x96xf32>,
    %c0_9 = arith.constant 0 : index
    %c0_10 = arith.constant 0 : index
    %9 = vector.load %arg4[%c0_9, %c0_10] : memref<32x96xf32, #tpu.memory_space<vmem>>, vector<32x96xf32>
    %c0_11 = arith.constant 0 : index
    %c0_12 = arith.constant 0 : index
    %10 = vector.load %arg5[%c0_11, %c0_12] : memref<1x96xf32, #tpu.memory_space<vmem>>, vector<1x96xf32>
    %11 = vector.shape_cast %10 : vector<1x96xf32> to vector<1x96xf32>
    %12 = vector.broadcast %11 : vector<1x96xf32> to vector<8x96xf32>
    %cst_13 = arith.constant 0.000000e+00 : f32
    %13 = vector.broadcast %cst_13 : f32 to vector<8x32xf32>
    %c0_i32 = arith.constant 0 : i32
    %14 = arith.index_cast %c0_i32 : i32 to index
    %c0_14 = arith.constant 0 : index
    %c0_15 = arith.constant 0 : index
    %15 = vector.load %arg17[%14, %c0_14, %c0_15] : memref<8x8x96xf32, #tpu.memory_space<vmem>>, vector<1x8x96xf32>
    %16 = vector.shape_cast %15 : vector<1x8x96xf32> to vector<8x96xf32>
    %cst_16 = arith.constant dense<0.000000e+00> : vector<8x96xf32>
    %17 = tpu.matmul %13, %9, %cst_16 {dimension_numbers = #tpu.dot_dimension_numbers<[1], [0], [0], [1], [0, 0, 1, 1], [], []>} : vector<8x32xf32>, vector<32x96xf32>, vector<8x96xf32> -> vector<8x96xf32>
    %18 = arith.addf %17, %12 : vector<8x96xf32>
    %19 = vector.extract_strided_slice %16 {offsets = [0, 0], sizes = [8, 32], strides = [1, 1]} : vector<8x96xf32> to vector<8x32xf32>
    %20 = vector.extract_strided_slice %18 {offsets = [0, 0], sizes = [8, 32], strides = [1, 1]} : vector<8x96xf32> to vector<8x32xf32>
    %21 = arith.addf %19, %20 : vector<8x32xf32>
    %22 = arith.negf %21 : vector<8x32xf32>
    %23 = math.exp %22 : vector<8x32xf32>
    %cst_17 = arith.constant 1.000000e+00 : f32
    %24 = vector.broadcast %cst_17 : f32 to vector<8x32xf32>
    %25 = arith.addf %24, %23 : vector<8x32xf32>
    %26 = arith.divf %24, %25 : vector<8x32xf32>
    %27 = vector.extract_strided_slice %16 {offsets = [0, 32], sizes = [8, 32], strides = [1, 1]} : vector<8x96xf32> to vector<8x32xf32>
    %28 = vector.extract_strided_slice %18 {offsets = [0, 32], sizes = [8, 32], strides = [1, 1]} : vector<8x96xf32> to vector<8x32xf32>
    %29 = arith.addf %27, %28 : vector<8x32xf32>
    %30 = arith.negf %29 : vector<8x32xf32>
    %31 = math.exp %30 : vector<8x32xf32>
    %cst_18 = arith.constant 1.000000e+00 : f32
    %32 = vector.broadcast %cst_18 : f32 to vector<8x32xf32>
    %33 = arith.addf %32, %31 : vector<8x32xf32>
    %34 = arith.divf %32, %33 : vector<8x32xf32>
    %35 = vector.extract_strided_slice %16 {offsets = [0, 64], sizes = [8, 32], strides = [1, 1]} : vector<8x96xf32> to vector<8x32xf32>
    %36 = vector.extract_strided_slice %18 {offsets = [0, 64], sizes = [8, 32], strides = [1, 1]} : vector<8x96xf32> to vector<8x32xf32>
    %37 = arith.mulf %26, %36 : vector<8x32xf32>
    %38 = arith.addf %35, %37 : vector<8x32xf32>
    %39 = math.tanh %38 : vector<8x32xf32>
    %cst_19 = arith.constant 1.000000e+00 : f32
    %40 = vector.broadcast %cst_19 : f32 to vector<8x32xf32>
    %41 = arith.subf %40, %34 : vector<8x32xf32>
    %42 = arith.mulf %41, %39 : vector<8x32xf32>
    %43 = arith.mulf %34, %13 : vector<8x32xf32>
    %44 = arith.addf %42, %43 : vector<8x32xf32>
    %45 = arith.index_cast %c0_i32 : i32 to index
    %c0_20 = arith.constant 0 : index
    %c0_21 = arith.constant 0 : index
    %46 = vector.load %arg17[%45, %c0_20, %c0_21] : memref<8x8x96xf32, #tpu.memory_space<vmem>>, vector<1x8x32xf32>
    %47 = vector.shape_cast %46 : vector<1x8x32xf32> to vector<8x32xf32>
    %48 = vector.shape_cast %44 : vector<8x32xf32> to vector<1x8x32xf32>
    tpu.vector_store %arg17[%45, %c0_20, %c0_21], %48 {strides = array<i32>} : memref<8x8x96xf32, #tpu.memory_space<vmem>>, vector<1x8x32xf32>,
    %c1_i32 = arith.constant 1 : i32
    %49 = arith.index_cast %c1_i32 : i32 to index
    %c0_22 = arith.constant 0 : index
    %c0_23 = arith.constant 0 : index
    %50 = vector.load %arg17[%49, %c0_22, %c0_23] : memref<8x8x96xf32, #tpu.memory_space<vmem>>, vector<1x8x96xf32>
    %51 = vector.shape_cast %50 : vector<1x8x96xf32> to vector<8x96xf32>
    %cst_24 = arith.constant dense<0.000000e+00> : vector<8x96xf32>
    %52 = tpu.matmul %44, %9, %cst_24 {dimension_numbers = #tpu.dot_dimension_numbers<[1], [0], [0], [1], [0, 0, 1, 1], [], []>} : vector<8x32xf32>, vector<32x96xf32>, vector<8x96xf32> -> vector<8x96xf32>
    %53 = arith.addf %52, %12 : vector<8x96xf32>
    %54 = vector.extract_strided_slice %51 {offsets = [0, 0], sizes = [8, 32], strides = [1, 1]} : vector<8x96xf32> to vector<8x32xf32>
    %55 = vector.extract_strided_slice %53 {offsets = [0, 0], sizes = [8, 32], strides = [1, 1]} : vector<8x96xf32> to vector<8x32xf32>
    %56 = arith.addf %54, %55 : vector<8x32xf32>
    %57 = arith.negf %56 : vector<8x32xf32>
    %58 = math.exp %57 : vector<8x32xf32>
    %cst_25 = arith.constant 1.000000e+00 : f32
    %59 = vector.broadcast %cst_25 : f32 to vector<8x32xf32>
    %60 = arith.addf %59, %58 : vector<8x32xf32>
    %61 = arith.divf %59, %60 : vector<8x32xf32>
    %62 = vector.extract_strided_slice %51 {offsets = [0, 32], sizes = [8, 32], strides = [1, 1]} : vector<8x96xf32> to vector<8x32xf32>
    %63 = vector.extract_strided_slice %53 {offsets = [0, 32], sizes = [8, 32], strides = [1, 1]} : vector<8x96xf32> to vector<8x32xf32>
    %64 = arith.addf %62, %63 : vector<8x32xf32>
    %65 = arith.negf %64 : vector<8x32xf32>
    %66 = math.exp %65 : vector<8x32xf32>
    %cst_26 = arith.constant 1.000000e+00 : f32
    %67 = vector.broadcast %cst_26 : f32 to vector<8x32xf32>
    %68 = arith.addf %67, %66 : vector<8x32xf32>
    %69 = arith.divf %67, %68 : vector<8x32xf32>
    %70 = vector.extract_strided_slice %51 {offsets = [0, 64], sizes = [8, 32], strides = [1, 1]} : vector<8x96xf32> to vector<8x32xf32>
    %71 = vector.extract_strided_slice %53 {offsets = [0, 64], sizes = [8, 32], strides = [1, 1]} : vector<8x96xf32> to vector<8x32xf32>
    %72 = arith.mulf %61, %71 : vector<8x32xf32>
    %73 = arith.addf %70, %72 : vector<8x32xf32>
    %74 = math.tanh %73 : vector<8x32xf32>
    %cst_27 = arith.constant 1.000000e+00 : f32
    %75 = vector.broadcast %cst_27 : f32 to vector<8x32xf32>
    %76 = arith.subf %75, %69 : vector<8x32xf32>
    %77 = arith.mulf %76, %74 : vector<8x32xf32>
    %78 = arith.mulf %69, %44 : vector<8x32xf32>
    %79 = arith.addf %77, %78 : vector<8x32xf32>
    %80 = arith.index_cast %c1_i32 : i32 to index
    %c0_28 = arith.constant 0 : index
    %c0_29 = arith.constant 0 : index
    %81 = vector.load %arg17[%80, %c0_28, %c0_29] : memref<8x8x96xf32, #tpu.memory_space<vmem>>, vector<1x8x32xf32>
    %82 = vector.shape_cast %81 : vector<1x8x32xf32> to vector<8x32xf32>
    %83 = vector.shape_cast %79 : vector<8x32xf32> to vector<1x8x32xf32>
    tpu.vector_store %arg17[%80, %c0_28, %c0_29], %83 {strides = array<i32>} : memref<8x8x96xf32, #tpu.memory_space<vmem>>, vector<1x8x32xf32>,
    %c2_i32 = arith.constant 2 : i32
    %84 = arith.index_cast %c2_i32 : i32 to index
    %c0_30 = arith.constant 0 : index
    %c0_31 = arith.constant 0 : index
    %85 = vector.load %arg17[%84, %c0_30, %c0_31] : memref<8x8x96xf32, #tpu.memory_space<vmem>>, vector<1x8x96xf32>
    %86 = vector.shape_cast %85 : vector<1x8x96xf32> to vector<8x96xf32>
    %cst_32 = arith.constant dense<0.000000e+00> : vector<8x96xf32>
    %87 = tpu.matmul %79, %9, %cst_32 {dimension_numbers = #tpu.dot_dimension_numbers<[1], [0], [0], [1], [0, 0, 1, 1], [], []>} : vector<8x32xf32>, vector<32x96xf32>, vector<8x96xf32> -> vector<8x96xf32>
    %88 = arith.addf %87, %12 : vector<8x96xf32>
    %89 = vector.extract_strided_slice %86 {offsets = [0, 0], sizes = [8, 32], strides = [1, 1]} : vector<8x96xf32> to vector<8x32xf32>
    %90 = vector.extract_strided_slice %88 {offsets = [0, 0], sizes = [8, 32], strides = [1, 1]} : vector<8x96xf32> to vector<8x32xf32>
    %91 = arith.addf %89, %90 : vector<8x32xf32>
    %92 = arith.negf %91 : vector<8x32xf32>
    %93 = math.exp %92 : vector<8x32xf32>
    %cst_33 = arith.constant 1.000000e+00 : f32
    %94 = vector.broadcast %cst_33 : f32 to vector<8x32xf32>
    %95 = arith.addf %94, %93 : vector<8x32xf32>
    %96 = arith.divf %94, %95 : vector<8x32xf32>
    %97 = vector.extract_strided_slice %86 {offsets = [0, 32], sizes = [8, 32], strides = [1, 1]} : vector<8x96xf32> to vector<8x32xf32>
    %98 = vector.extract_strided_slice %88 {offsets = [0, 32], sizes = [8, 32], strides = [1, 1]} : vector<8x96xf32> to vector<8x32xf32>
    %99 = arith.addf %97, %98 : vector<8x32xf32>
    %100 = arith.negf %99 : vector<8x32xf32>
    %101 = math.exp %100 : vector<8x32xf32>
    %cst_34 = arith.constant 1.000000e+00 : f32
    %102 = vector.broadcast %cst_34 : f32 to vector<8x32xf32>
    %103 = arith.addf %102, %101 : vector<8x32xf32>
    %104 = arith.divf %102, %103 : vector<8x32xf32>
    %105 = vector.extract_strided_slice %86 {offsets = [0, 64], sizes = [8, 32], strides = [1, 1]} : vector<8x96xf32> to vector<8x32xf32>
    %106 = vector.extract_strided_slice %88 {offsets = [0, 64], sizes = [8, 32], strides = [1, 1]} : vector<8x96xf32> to vector<8x32xf32>
    %107 = arith.mulf %96, %106 : vector<8x32xf32>
    %108 = arith.addf %105, %107 : vector<8x32xf32>
    %109 = math.tanh %108 : vector<8x32xf32>
    %cst_35 = arith.constant 1.000000e+00 : f32
    %110 = vector.broadcast %cst_35 : f32 to vector<8x32xf32>
    %111 = arith.subf %110, %104 : vector<8x32xf32>
    %112 = arith.mulf %111, %109 : vector<8x32xf32>
    %113 = arith.mulf %104, %79 : vector<8x32xf32>
    %114 = arith.addf %112, %113 : vector<8x32xf32>
    %115 = arith.index_cast %c2_i32 : i32 to index
    %c0_36 = arith.constant 0 : index
    %c0_37 = arith.constant 0 : index
    %116 = vector.load %arg17[%115, %c0_36, %c0_37] : memref<8x8x96xf32, #tpu.memory_space<vmem>>, vector<1x8x32xf32>
    %117 = vector.shape_cast %116 : vector<1x8x32xf32> to vector<8x32xf32>
    %118 = vector.shape_cast %114 : vector<8x32xf32> to vector<1x8x32xf32>
    tpu.vector_store %arg17[%115, %c0_36, %c0_37], %118 {strides = array<i32>} : memref<8x8x96xf32, #tpu.memory_space<vmem>>, vector<1x8x32xf32>,
    %c3_i32 = arith.constant 3 : i32
    %119 = arith.index_cast %c3_i32 : i32 to index
    %c0_38 = arith.constant 0 : index
    %c0_39 = arith.constant 0 : index
    %120 = vector.load %arg17[%119, %c0_38, %c0_39] : memref<8x8x96xf32, #tpu.memory_space<vmem>>, vector<1x8x96xf32>
    %121 = vector.shape_cast %120 : vector<1x8x96xf32> to vector<8x96xf32>
    %cst_40 = arith.constant dense<0.000000e+00> : vector<8x96xf32>
    %122 = tpu.matmul %114, %9, %cst_40 {dimension_numbers = #tpu.dot_dimension_numbers<[1], [0], [0], [1], [0, 0, 1, 1], [], []>} : vector<8x32xf32>, vector<32x96xf32>, vector<8x96xf32> -> vector<8x96xf32>
    %123 = arith.addf %122, %12 : vector<8x96xf32>
    %124 = vector.extract_strided_slice %121 {offsets = [0, 0], sizes = [8, 32], strides = [1, 1]} : vector<8x96xf32> to vector<8x32xf32>
    %125 = vector.extract_strided_slice %123 {offsets = [0, 0], sizes = [8, 32], strides = [1, 1]} : vector<8x96xf32> to vector<8x32xf32>
    %126 = arith.addf %124, %125 : vector<8x32xf32>
    %127 = arith.negf %126 : vector<8x32xf32>
    %128 = math.exp %127 : vector<8x32xf32>
    %cst_41 = arith.constant 1.000000e+00 : f32
    %129 = vector.broadcast %cst_41 : f32 to vector<8x32xf32>
    %130 = arith.addf %129, %128 : vector<8x32xf32>
    %131 = arith.divf %129, %130 : vector<8x32xf32>
    %132 = vector.extract_strided_slice %121 {offsets = [0, 32], sizes = [8, 32], strides = [1, 1]} : vector<8x96xf32> to vector<8x32xf32>
    %133 = vector.extract_strided_slice %123 {offsets = [0, 32], sizes = [8, 32], strides = [1, 1]} : vector<8x96xf32> to vector<8x32xf32>
    %134 = arith.addf %132, %133 : vector<8x32xf32>
    %135 = arith.negf %134 : vector<8x32xf32>
    %136 = math.exp %135 : vector<8x32xf32>
    %cst_42 = arith.constant 1.000000e+00 : f32
    %137 = vector.broadcast %cst_42 : f32 to vector<8x32xf32>
    %138 = arith.addf %137, %136 : vector<8x32xf32>
    %139 = arith.divf %137, %138 : vector<8x32xf32>
    %140 = vector.extract_strided_slice %121 {offsets = [0, 64], sizes = [8, 32], strides = [1, 1]} : vector<8x96xf32> to vector<8x32xf32>
    %141 = vector.extract_strided_slice %123 {offsets = [0, 64], sizes = [8, 32], strides = [1, 1]} : vector<8x96xf32> to vector<8x32xf32>
    %142 = arith.mulf %131, %141 : vector<8x32xf32>
    %143 = arith.addf %140, %142 : vector<8x32xf32>
    %144 = math.tanh %143 : vector<8x32xf32>
    %cst_43 = arith.constant 1.000000e+00 : f32
    %145 = vector.broadcast %cst_43 : f32 to vector<8x32xf32>
    %146 = arith.subf %145, %139 : vector<8x32xf32>
    %147 = arith.mulf %146, %144 : vector<8x32xf32>
    %148 = arith.mulf %139, %114 : vector<8x32xf32>
    %149 = arith.addf %147, %148 : vector<8x32xf32>
    %150 = arith.index_cast %c3_i32 : i32 to index
    %c0_44 = arith.constant 0 : index
    %c0_45 = arith.constant 0 : index
    %151 = vector.load %arg17[%150, %c0_44, %c0_45] : memref<8x8x96xf32, #tpu.memory_space<vmem>>, vector<1x8x32xf32>
    %152 = vector.shape_cast %151 : vector<1x8x32xf32> to vector<8x32xf32>
    %153 = vector.shape_cast %149 : vector<8x32xf32> to vector<1x8x32xf32>
    tpu.vector_store %arg17[%150, %c0_44, %c0_45], %153 {strides = array<i32>} : memref<8x8x96xf32, #tpu.memory_space<vmem>>, vector<1x8x32xf32>,
    %c4_i32 = arith.constant 4 : i32
    %154 = arith.index_cast %c4_i32 : i32 to index
    %c0_46 = arith.constant 0 : index
    %c0_47 = arith.constant 0 : index
    %155 = vector.load %arg17[%154, %c0_46, %c0_47] : memref<8x8x96xf32, #tpu.memory_space<vmem>>, vector<1x8x96xf32>
    %156 = vector.shape_cast %155 : vector<1x8x96xf32> to vector<8x96xf32>
    %cst_48 = arith.constant dense<0.000000e+00> : vector<8x96xf32>
    %157 = tpu.matmul %149, %9, %cst_48 {dimension_numbers = #tpu.dot_dimension_numbers<[1], [0], [0], [1], [0, 0, 1, 1], [], []>} : vector<8x32xf32>, vector<32x96xf32>, vector<8x96xf32> -> vector<8x96xf32>
    %158 = arith.addf %157, %12 : vector<8x96xf32>
    %159 = vector.extract_strided_slice %156 {offsets = [0, 0], sizes = [8, 32], strides = [1, 1]} : vector<8x96xf32> to vector<8x32xf32>
    %160 = vector.extract_strided_slice %158 {offsets = [0, 0], sizes = [8, 32], strides = [1, 1]} : vector<8x96xf32> to vector<8x32xf32>
    %161 = arith.addf %159, %160 : vector<8x32xf32>
    %162 = arith.negf %161 : vector<8x32xf32>
    %163 = math.exp %162 : vector<8x32xf32>
    %cst_49 = arith.constant 1.000000e+00 : f32
    %164 = vector.broadcast %cst_49 : f32 to vector<8x32xf32>
    %165 = arith.addf %164, %163 : vector<8x32xf32>
    %166 = arith.divf %164, %165 : vector<8x32xf32>
    %167 = vector.extract_strided_slice %156 {offsets = [0, 32], sizes = [8, 32], strides = [1, 1]} : vector<8x96xf32> to vector<8x32xf32>
    %168 = vector.extract_strided_slice %158 {offsets = [0, 32], sizes = [8, 32], strides = [1, 1]} : vector<8x96xf32> to vector<8x32xf32>
    %169 = arith.addf %167, %168 : vector<8x32xf32>
    %170 = arith.negf %169 : vector<8x32xf32>
    %171 = math.exp %170 : vector<8x32xf32>
    %cst_50 = arith.constant 1.000000e+00 : f32
    %172 = vector.broadcast %cst_50 : f32 to vector<8x32xf32>
    %173 = arith.addf %172, %171 : vector<8x32xf32>
    %174 = arith.divf %172, %173 : vector<8x32xf32>
    %175 = vector.extract_strided_slice %156 {offsets = [0, 64], sizes = [8, 32], strides = [1, 1]} : vector<8x96xf32> to vector<8x32xf32>
    %176 = vector.extract_strided_slice %158 {offsets = [0, 64], sizes = [8, 32], strides = [1, 1]} : vector<8x96xf32> to vector<8x32xf32>
    %177 = arith.mulf %166, %176 : vector<8x32xf32>
    %178 = arith.addf %175, %177 : vector<8x32xf32>
    %179 = math.tanh %178 : vector<8x32xf32>
    %cst_51 = arith.constant 1.000000e+00 : f32
    %180 = vector.broadcast %cst_51 : f32 to vector<8x32xf32>
    %181 = arith.subf %180, %174 : vector<8x32xf32>
    %182 = arith.mulf %181, %179 : vector<8x32xf32>
    %183 = arith.mulf %174, %149 : vector<8x32xf32>
    %184 = arith.addf %182, %183 : vector<8x32xf32>
    %185 = arith.index_cast %c4_i32 : i32 to index
    %c0_52 = arith.constant 0 : index
    %c0_53 = arith.constant 0 : index
    %186 = vector.load %arg17[%185, %c0_52, %c0_53] : memref<8x8x96xf32, #tpu.memory_space<vmem>>, vector<1x8x32xf32>
    %187 = vector.shape_cast %186 : vector<1x8x32xf32> to vector<8x32xf32>
    %188 = vector.shape_cast %184 : vector<8x32xf32> to vector<1x8x32xf32>
    tpu.vector_store %arg17[%185, %c0_52, %c0_53], %188 {strides = array<i32>} : memref<8x8x96xf32, #tpu.memory_space<vmem>>, vector<1x8x32xf32>,
    %c5_i32 = arith.constant 5 : i32
    %189 = arith.index_cast %c5_i32 : i32 to index
    %c0_54 = arith.constant 0 : index
    %c0_55 = arith.constant 0 : index
    %190 = vector.load %arg17[%189, %c0_54, %c0_55] : memref<8x8x96xf32, #tpu.memory_space<vmem>>, vector<1x8x96xf32>
    %191 = vector.shape_cast %190 : vector<1x8x96xf32> to vector<8x96xf32>
    %cst_56 = arith.constant dense<0.000000e+00> : vector<8x96xf32>
    %192 = tpu.matmul %184, %9, %cst_56 {dimension_numbers = #tpu.dot_dimension_numbers<[1], [0], [0], [1], [0, 0, 1, 1], [], []>} : vector<8x32xf32>, vector<32x96xf32>, vector<8x96xf32> -> vector<8x96xf32>
    %193 = arith.addf %192, %12 : vector<8x96xf32>
    %194 = vector.extract_strided_slice %191 {offsets = [0, 0], sizes = [8, 32], strides = [1, 1]} : vector<8x96xf32> to vector<8x32xf32>
    %195 = vector.extract_strided_slice %193 {offsets = [0, 0], sizes = [8, 32], strides = [1, 1]} : vector<8x96xf32> to vector<8x32xf32>
    %196 = arith.addf %194, %195 : vector<8x32xf32>
    %197 = arith.negf %196 : vector<8x32xf32>
    %198 = math.exp %197 : vector<8x32xf32>
    %cst_57 = arith.constant 1.000000e+00 : f32
    %199 = vector.broadcast %cst_57 : f32 to vector<8x32xf32>
    %200 = arith.addf %199, %198 : vector<8x32xf32>
    %201 = arith.divf %199, %200 : vector<8x32xf32>
    %202 = vector.extract_strided_slice %191 {offsets = [0, 32], sizes = [8, 32], strides = [1, 1]} : vector<8x96xf32> to vector<8x32xf32>
    %203 = vector.extract_strided_slice %193 {offsets = [0, 32], sizes = [8, 32], strides = [1, 1]} : vector<8x96xf32> to vector<8x32xf32>
    %204 = arith.addf %202, %203 : vector<8x32xf32>
    %205 = arith.negf %204 : vector<8x32xf32>
    %206 = math.exp %205 : vector<8x32xf32>
    %cst_58 = arith.constant 1.000000e+00 : f32
    %207 = vector.broadcast %cst_58 : f32 to vector<8x32xf32>
    %208 = arith.addf %207, %206 : vector<8x32xf32>
    %209 = arith.divf %207, %208 : vector<8x32xf32>
    %210 = vector.extract_strided_slice %191 {offsets = [0, 64], sizes = [8, 32], strides = [1, 1]} : vector<8x96xf32> to vector<8x32xf32>
    %211 = vector.extract_strided_slice %193 {offsets = [0, 64], sizes = [8, 32], strides = [1, 1]} : vector<8x96xf32> to vector<8x32xf32>
    %212 = arith.mulf %201, %211 : vector<8x32xf32>
    %213 = arith.addf %210, %212 : vector<8x32xf32>
    %214 = math.tanh %213 : vector<8x32xf32>
    %cst_59 = arith.constant 1.000000e+00 : f32
    %215 = vector.broadcast %cst_59 : f32 to vector<8x32xf32>
    %216 = arith.subf %215, %209 : vector<8x32xf32>
    %217 = arith.mulf %216, %214 : vector<8x32xf32>
    %218 = arith.mulf %209, %184 : vector<8x32xf32>
    %219 = arith.addf %217, %218 : vector<8x32xf32>
    %220 = arith.index_cast %c5_i32 : i32 to index
    %c0_60 = arith.constant 0 : index
    %c0_61 = arith.constant 0 : index
    %221 = vector.load %arg17[%220, %c0_60, %c0_61] : memref<8x8x96xf32, #tpu.memory_space<vmem>>, vector<1x8x32xf32>
    %222 = vector.shape_cast %221 : vector<1x8x32xf32> to vector<8x32xf32>
    %223 = vector.shape_cast %219 : vector<8x32xf32> to vector<1x8x32xf32>
    tpu.vector_store %arg17[%220, %c0_60, %c0_61], %223 {strides = array<i32>} : memref<8x8x96xf32, #tpu.memory_space<vmem>>, vector<1x8x32xf32>,
    %c6_i32 = arith.constant 6 : i32
    %224 = arith.index_cast %c6_i32 : i32 to index
    %c0_62 = arith.constant 0 : index
    %c0_63 = arith.constant 0 : index
    %225 = vector.load %arg17[%224, %c0_62, %c0_63] : memref<8x8x96xf32, #tpu.memory_space<vmem>>, vector<1x8x96xf32>
    %226 = vector.shape_cast %225 : vector<1x8x96xf32> to vector<8x96xf32>
    %cst_64 = arith.constant dense<0.000000e+00> : vector<8x96xf32>
    %227 = tpu.matmul %219, %9, %cst_64 {dimension_numbers = #tpu.dot_dimension_numbers<[1], [0], [0], [1], [0, 0, 1, 1], [], []>} : vector<8x32xf32>, vector<32x96xf32>, vector<8x96xf32> -> vector<8x96xf32>
    %228 = arith.addf %227, %12 : vector<8x96xf32>
    %229 = vector.extract_strided_slice %226 {offsets = [0, 0], sizes = [8, 32], strides = [1, 1]} : vector<8x96xf32> to vector<8x32xf32>
    %230 = vector.extract_strided_slice %228 {offsets = [0, 0], sizes = [8, 32], strides = [1, 1]} : vector<8x96xf32> to vector<8x32xf32>
    %231 = arith.addf %229, %230 : vector<8x32xf32>
    %232 = arith.negf %231 : vector<8x32xf32>
    %233 = math.exp %232 : vector<8x32xf32>
    %cst_65 = arith.constant 1.000000e+00 : f32
    %234 = vector.broadcast %cst_65 : f32 to vector<8x32xf32>
    %235 = arith.addf %234, %233 : vector<8x32xf32>
    %236 = arith.divf %234, %235 : vector<8x32xf32>
    %237 = vector.extract_strided_slice %226 {offsets = [0, 32], sizes = [8, 32], strides = [1, 1]} : vector<8x96xf32> to vector<8x32xf32>
    %238 = vector.extract_strided_slice %228 {offsets = [0, 32], sizes = [8, 32], strides = [1, 1]} : vector<8x96xf32> to vector<8x32xf32>
    %239 = arith.addf %237, %238 : vector<8x32xf32>
    %240 = arith.negf %239 : vector<8x32xf32>
    %241 = math.exp %240 : vector<8x32xf32>
    %cst_66 = arith.constant 1.000000e+00 : f32
    %242 = vector.broadcast %cst_66 : f32 to vector<8x32xf32>
    %243 = arith.addf %242, %241 : vector<8x32xf32>
    %244 = arith.divf %242, %243 : vector<8x32xf32>
    %245 = vector.extract_strided_slice %226 {offsets = [0, 64], sizes = [8, 32], strides = [1, 1]} : vector<8x96xf32> to vector<8x32xf32>
    %246 = vector.extract_strided_slice %228 {offsets = [0, 64], sizes = [8, 32], strides = [1, 1]} : vector<8x96xf32> to vector<8x32xf32>
    %247 = arith.mulf %236, %246 : vector<8x32xf32>
    %248 = arith.addf %245, %247 : vector<8x32xf32>
    %249 = math.tanh %248 : vector<8x32xf32>
    %cst_67 = arith.constant 1.000000e+00 : f32
    %250 = vector.broadcast %cst_67 : f32 to vector<8x32xf32>
    %251 = arith.subf %250, %244 : vector<8x32xf32>
    %252 = arith.mulf %251, %249 : vector<8x32xf32>
    %253 = arith.mulf %244, %219 : vector<8x32xf32>
    %254 = arith.addf %252, %253 : vector<8x32xf32>
    %255 = arith.index_cast %c6_i32 : i32 to index
    %c0_68 = arith.constant 0 : index
    %c0_69 = arith.constant 0 : index
    %256 = vector.load %arg17[%255, %c0_68, %c0_69] : memref<8x8x96xf32, #tpu.memory_space<vmem>>, vector<1x8x32xf32>
    %257 = vector.shape_cast %256 : vector<1x8x32xf32> to vector<8x32xf32>
    %258 = vector.shape_cast %254 : vector<8x32xf32> to vector<1x8x32xf32>
    tpu.vector_store %arg17[%255, %c0_68, %c0_69], %258 {strides = array<i32>} : memref<8x8x96xf32, #tpu.memory_space<vmem>>, vector<1x8x32xf32>,
    %c7_i32 = arith.constant 7 : i32
    %259 = arith.index_cast %c7_i32 : i32 to index
    %c0_70 = arith.constant 0 : index
    %c0_71 = arith.constant 0 : index
    %260 = vector.load %arg17[%259, %c0_70, %c0_71] : memref<8x8x96xf32, #tpu.memory_space<vmem>>, vector<1x8x96xf32>
    %261 = vector.shape_cast %260 : vector<1x8x96xf32> to vector<8x96xf32>
    %cst_72 = arith.constant dense<0.000000e+00> : vector<8x96xf32>
    %262 = tpu.matmul %254, %9, %cst_72 {dimension_numbers = #tpu.dot_dimension_numbers<[1], [0], [0], [1], [0, 0, 1, 1], [], []>} : vector<8x32xf32>, vector<32x96xf32>, vector<8x96xf32> -> vector<8x96xf32>
    %263 = arith.addf %262, %12 : vector<8x96xf32>
    %264 = vector.extract_strided_slice %261 {offsets = [0, 0], sizes = [8, 32], strides = [1, 1]} : vector<8x96xf32> to vector<8x32xf32>
    %265 = vector.extract_strided_slice %263 {offsets = [0, 0], sizes = [8, 32], strides = [1, 1]} : vector<8x96xf32> to vector<8x32xf32>
    %266 = arith.addf %264, %265 : vector<8x32xf32>
    %267 = arith.negf %266 : vector<8x32xf32>
    %268 = math.exp %267 : vector<8x32xf32>
    %cst_73 = arith.constant 1.000000e+00 : f32
    %269 = vector.broadcast %cst_73 : f32 to vector<8x32xf32>
    %270 = arith.addf %269, %268 : vector<8x32xf32>
    %271 = arith.divf %269, %270 : vector<8x32xf32>
    %272 = vector.extract_strided_slice %261 {offsets = [0, 32], sizes = [8, 32], strides = [1, 1]} : vector<8x96xf32> to vector<8x32xf32>
    %273 = vector.extract_strided_slice %263 {offsets = [0, 32], sizes = [8, 32], strides = [1, 1]} : vector<8x96xf32> to vector<8x32xf32>
    %274 = arith.addf %272, %273 : vector<8x32xf32>
    %275 = arith.negf %274 : vector<8x32xf32>
    %276 = math.exp %275 : vector<8x32xf32>
    %cst_74 = arith.constant 1.000000e+00 : f32
    %277 = vector.broadcast %cst_74 : f32 to vector<8x32xf32>
    %278 = arith.addf %277, %276 : vector<8x32xf32>
    %279 = arith.divf %277, %278 : vector<8x32xf32>
    %280 = vector.extract_strided_slice %261 {offsets = [0, 64], sizes = [8, 32], strides = [1, 1]} : vector<8x96xf32> to vector<8x32xf32>
    %281 = vector.extract_strided_slice %263 {offsets = [0, 64], sizes = [8, 32], strides = [1, 1]} : vector<8x96xf32> to vector<8x32xf32>
    %282 = arith.mulf %271, %281 : vector<8x32xf32>
    %283 = arith.addf %280, %282 : vector<8x32xf32>
    %284 = math.tanh %283 : vector<8x32xf32>
    %cst_75 = arith.constant 1.000000e+00 : f32
    %285 = vector.broadcast %cst_75 : f32 to vector<8x32xf32>
    %286 = arith.subf %285, %279 : vector<8x32xf32>
    %287 = arith.mulf %286, %284 : vector<8x32xf32>
    %288 = arith.mulf %279, %254 : vector<8x32xf32>
    %289 = arith.addf %287, %288 : vector<8x32xf32>
    %290 = arith.index_cast %c7_i32 : i32 to index
    %c0_76 = arith.constant 0 : index
    %c0_77 = arith.constant 0 : index
    %291 = vector.load %arg17[%290, %c0_76, %c0_77] : memref<8x8x96xf32, #tpu.memory_space<vmem>>, vector<1x8x32xf32>
    %292 = vector.shape_cast %291 : vector<1x8x32xf32> to vector<8x32xf32>
    %293 = vector.shape_cast %289 : vector<8x32xf32> to vector<1x8x32xf32>
    tpu.vector_store %arg17[%290, %c0_76, %c0_77], %293 {strides = array<i32>} : memref<8x8x96xf32, #tpu.memory_space<vmem>>, vector<1x8x32xf32>,
    %c8_i32 = arith.constant 8 : i32
    %c0_78 = arith.constant 0 : index
    %c0_79 = arith.constant 0 : index
    %c0_80 = arith.constant 0 : index
    %294 = vector.load %arg17[%c0_78, %c0_79, %c0_80] : memref<8x8x96xf32, #tpu.memory_space<vmem>>, vector<8x8x32xf32>
    %295 = vector.shape_cast %294 : vector<8x8x32xf32> to vector<64x32xf32>
    %c0_81 = arith.constant 0 : index
    %c0_82 = arith.constant 0 : index
    %296 = vector.load %arg6[%c0_81, %c0_82] : memref<32x32xf32, #tpu.memory_space<vmem>>, vector<32x32xf32>
    %cst_83 = arith.constant dense<0.000000e+00> : vector<8x32xf32>
    %297 = tpu.matmul %289, %296, %cst_83 {dimension_numbers = #tpu.dot_dimension_numbers<[1], [0], [0], [1], [0, 0, 1, 1], [], []>} : vector<8x32xf32>, vector<32x32xf32>, vector<8x32xf32> -> vector<8x32xf32>
    %c0_84 = arith.constant 0 : index
    %c0_85 = arith.constant 0 : index
    %298 = vector.load %arg7[%c0_84, %c0_85] : memref<1x32xf32, #tpu.memory_space<vmem>>, vector<1x32xf32>
    %299 = vector.broadcast %298 : vector<1x32xf32> to vector<8x32xf32>
    %300 = arith.addf %297, %299 : vector<8x32xf32>
    %cst_86 = arith.constant 0.353553385 : f32
    %301 = vector.broadcast %cst_86 : f32 to vector<8x32xf32>
    %302 = arith.mulf %300, %301 : vector<8x32xf32>
    %c0_87 = arith.constant 0 : index
    %c0_88 = arith.constant 0 : index
    %303 = vector.load %arg8[%c0_87, %c0_88] : memref<32x64xf32, #tpu.memory_space<vmem>>, vector<32x64xf32>
    %cst_89 = arith.constant dense<0.000000e+00> : vector<64x64xf32>
    %304 = tpu.matmul %295, %303, %cst_89 {dimension_numbers = #tpu.dot_dimension_numbers<[1], [0], [0], [1], [0, 0, 1, 1], [], []>} : vector<64x32xf32>, vector<32x64xf32>, vector<64x64xf32> -> vector<64x64xf32>
    %c0_90 = arith.constant 0 : index
    %c0_91 = arith.constant 0 : index
    %305 = vector.load %arg9[%c0_90, %c0_91] : memref<1x64xf32, #tpu.memory_space<vmem>>, vector<1x64xf32>
    %306 = vector.broadcast %305 : vector<1x64xf32> to vector<64x64xf32>
    %307 = arith.addf %304, %306 : vector<64x64xf32>
    %308 = vector.shape_cast %307 : vector<64x64xf32> to vector<8x8x64xf32>
    %309 = vector.extract_strided_slice %308 {offsets = [0, 0, 0], sizes = [8, 8, 32], strides = [1, 1, 1]} : vector<8x8x64xf32> to vector<8x8x32xf32>
    %310 = vector.extract_strided_slice %308 {offsets = [0, 0, 32], sizes = [8, 8, 32], strides = [1, 1, 1]} : vector<8x8x64xf32> to vector<8x8x32xf32>
    %311 = vector.shape_cast %302 : vector<8x32xf32> to vector<1x8x32xf32>
    %312 = vector.broadcast %311 : vector<1x8x32xf32> to vector<8x8x32xf32>
    %313 = arith.mulf %312, %309 : vector<8x8x32xf32>
    %314 = vector.shape_cast %313 : vector<8x8x32xf32> to vector<64x32xf32>
    %c0_92 = arith.constant 0 : index
    %c0_93 = arith.constant 0 : index
    %315 = vector.load %arg14[%c0_92, %c0_93] : memref<32x4xf32, #tpu.memory_space<vmem>>, vector<32x4xf32>
    %cst_94 = arith.constant dense<0.000000e+00> : vector<64x4xf32>
    %316 = tpu.matmul %314, %315, %cst_94 {dimension_numbers = #tpu.dot_dimension_numbers<[1], [0], [0], [1], [0, 0, 1, 1], [], []>} : vector<64x32xf32>, vector<32x4xf32>, vector<64x4xf32> -> vector<64x4xf32>
    %317 = vector.shape_cast %316 : vector<64x4xf32> to vector<8x8x4xf32>
    %cst_95 = arith.constant dense<0xFF800000> : vector<8x4xf32>
    %318 = vector.multi_reduction <maximumf>, %317, %cst_95 [0] : vector<8x8x4xf32> to vector<8x4xf32>
    %319 = vector.shape_cast %318 : vector<8x4xf32> to vector<1x8x4xf32>
    %320 = vector.broadcast %319 : vector<1x8x4xf32> to vector<8x8x4xf32>
    %321 = arith.subf %317, %320 : vector<8x8x4xf32>
    %322 = math.exp %321 : vector<8x8x4xf32>
    %cst_96 = arith.constant dense<0.000000e+00> : vector<8x4xf32>
    %323 = vector.multi_reduction <add>, %322, %cst_96 [0] : vector<8x8x4xf32> to vector<8x4xf32>
    %324 = vector.shape_cast %323 : vector<8x4xf32> to vector<1x8x4xf32>
    %325 = vector.broadcast %324 : vector<1x8x4xf32> to vector<8x8x4xf32>
    %326 = arith.divf %322, %325 : vector<8x8x4xf32>
    %327 = vector.shape_cast %326 : vector<8x8x4xf32> to vector<64x4xf32>
    %c0_97 = arith.constant 0 : index
    %c0_98 = arith.constant 0 : index
    %328 = vector.load %arg15[%c0_97, %c0_98] : memref<4x32xf32, #tpu.memory_space<vmem>>, vector<4x32xf32>
    %cst_99 = arith.constant dense<0.000000e+00> : vector<64x32xf32>
    %329 = tpu.matmul %327, %328, %cst_99 {dimension_numbers = #tpu.dot_dimension_numbers<[1], [0], [0], [1], [0, 0, 1, 1], [], []>} : vector<64x4xf32>, vector<4x32xf32>, vector<64x32xf32> -> vector<64x32xf32>
    %330 = vector.shape_cast %329 : vector<64x32xf32> to vector<8x8x32xf32>
    %331 = arith.mulf %330, %310 : vector<8x8x32xf32>
    %cst_100 = arith.constant dense<0.000000e+00> : vector<8x32xf32>
    %332 = vector.multi_reduction <add>, %331, %cst_100 [0] : vector<8x8x32xf32> to vector<8x32xf32>
    %c0_101 = arith.constant 0 : index
    %c0_102 = arith.constant 0 : index
    %333 = vector.load %arg10[%c0_101, %c0_102] : memref<32x32xf32, #tpu.memory_space<vmem>>, vector<32x32xf32>
    %cst_103 = arith.constant dense<0.000000e+00> : vector<8x32xf32>
    %334 = tpu.matmul %332, %333, %cst_103 {dimension_numbers = #tpu.dot_dimension_numbers<[1], [0], [0], [1], [0, 0, 1, 1], [], []>} : vector<8x32xf32>, vector<32x32xf32>, vector<8x32xf32> -> vector<8x32xf32>
    %c0_104 = arith.constant 0 : index
    %c0_105 = arith.constant 0 : index
    %335 = vector.load %arg11[%c0_104, %c0_105] : memref<1x32xf32, #tpu.memory_space<vmem>>, vector<1x32xf32>
    %336 = vector.broadcast %335 : vector<1x32xf32> to vector<8x32xf32>
    %337 = arith.addf %334, %336 : vector<8x32xf32>
    %c0_106 = arith.constant 0 : index
    %c0_107 = arith.constant 0 : index
    %338 = vector.load %arg12[%c0_106, %c0_107] : memref<32x128xf32, #tpu.memory_space<vmem>>, vector<32x128xf32>
    %cst_108 = arith.constant dense<0.000000e+00> : vector<8x128xf32>
    %339 = tpu.matmul %337, %338, %cst_108 {dimension_numbers = #tpu.dot_dimension_numbers<[1], [0], [0], [1], [0, 0, 1, 1], [], []>} : vector<8x32xf32>, vector<32x128xf32>, vector<8x128xf32> -> vector<8x128xf32>
    %c0_109 = arith.constant 0 : index
    %c0_110 = arith.constant 0 : index
    %340 = vector.load %arg13[%c0_109, %c0_110] : memref<1x128xf32, #tpu.memory_space<vmem>>, vector<1x128xf32>
    %341 = vector.broadcast %340 : vector<1x128xf32> to vector<8x128xf32>
    %342 = arith.addf %339, %341 : vector<8x128xf32>
    %cst_111 = arith.constant dense<0xFF800000> : vector<8xf32>
    %343 = vector.multi_reduction <maximumf>, %342, %cst_111 [1] : vector<8x128xf32> to vector<8xf32>
    %344 = vector.shape_cast %343 : vector<8xf32> to vector<8x1xf32>
    %345 = vector.broadcast %344 : vector<8x1xf32> to vector<8x128xf32>
    %346 = arith.subf %342, %345 : vector<8x128xf32>
    %347 = math.exp %346 : vector<8x128xf32>
    %cst_112 = arith.constant dense<0.000000e+00> : vector<8xf32>
    %348 = vector.multi_reduction <add>, %347, %cst_112 [1] : vector<8x128xf32> to vector<8xf32>
    %349 = vector.shape_cast %348 : vector<8xf32> to vector<8x1xf32>
    %350 = vector.broadcast %349 : vector<8x1xf32> to vector<8x128xf32>
    %351 = arith.divf %347, %350 : vector<8x128xf32>
    %c0_113 = arith.constant 0 : index
    %c0_114 = arith.constant 0 : index
    %352 = vector.load %arg16[%c0_113, %c0_114] : memref<8x128xf32, #tpu.memory_space<vmem>>, vector<8x128xf32>
    tpu.vector_store %arg16[%c0_113, %c0_114], %351 {strides = array<i32>} : memref<8x128xf32, #tpu.memory_space<vmem>>, vector<8x128xf32>,
    return
  }
  func.func @transform_0(%arg0: i32) -> (i32, i32, i32) {
    %c0_i32 = arith.constant 0 : i32
    %c0_i32_0 = arith.constant 0 : i32
    %c0_i32_1 = arith.constant 0 : i32
    return %c0_i32, %arg0, %c0_i32_0 : i32, i32, i32
  }
  func.func @transform_1(%arg0: i32) -> (i32, i32) {
    %c0_i32 = arith.constant 0 : i32
    %c0_i32_0 = arith.constant 0 : i32
    %c0_i32_1 = arith.constant 0 : i32
    return %c0_i32, %c0_i32_0 : i32, i32
  }
  func.func @transform_2(%arg0: i32) -> (i32, i32) {
    %c0_i32 = arith.constant 0 : i32
    %c0_i32_0 = arith.constant 0 : i32
    %c0_i32_1 = arith.constant 0 : i32
    return %c0_i32, %c0_i32_0 : i32, i32
  }
  func.func @transform_3(%arg0: i32) -> (i32, i32) {
    %c0_i32 = arith.constant 0 : i32
    %c0_i32_0 = arith.constant 0 : i32
    %c0_i32_1 = arith.constant 0 : i32
    return %c0_i32, %c0_i32_0 : i32, i32
  }
  func.func @transform_4(%arg0: i32) -> (i32, i32) {
    %c0_i32 = arith.constant 0 : i32
    %c0_i32_0 = arith.constant 0 : i32
    %c0_i32_1 = arith.constant 0 : i32
    return %c0_i32, %c0_i32_0 : i32, i32
  }
  func.func @transform_5(%arg0: i32) -> (i32, i32) {
    %c0_i32 = arith.constant 0 : i32
    %c0_i32_0 = arith.constant 0 : i32
    %c0_i32_1 = arith.constant 0 : i32
    return %c0_i32, %c0_i32_0 : i32, i32
  }
  func.func @transform_6(%arg0: i32) -> (i32, i32) {
    %c0_i32 = arith.constant 0 : i32
    %c0_i32_0 = arith.constant 0 : i32
    %c0_i32_1 = arith.constant 0 : i32
    return %c0_i32, %c0_i32_0 : i32, i32
  }
  func.func @transform_7(%arg0: i32) -> (i32, i32) {
    %c0_i32 = arith.constant 0 : i32
    %c0_i32_0 = arith.constant 0 : i32
    %c0_i32_1 = arith.constant 0 : i32
    return %c0_i32, %c0_i32_0 : i32, i32
  }
  func.func @transform_8(%arg0: i32) -> (i32, i32) {
    %c0_i32 = arith.constant 0 : i32
    %c0_i32_0 = arith.constant 0 : i32
    %c0_i32_1 = arith.constant 0 : i32
    return %c0_i32, %c0_i32_0 : i32, i32
  }
  func.func @transform_9(%arg0: i32) -> (i32, i32) {
    %c0_i32 = arith.constant 0 : i32
    %c0_i32_0 = arith.constant 0 : i32
    %c0_i32_1 = arith.constant 0 : i32
    return %c0_i32, %c0_i32_0 : i32, i32
  }
  func.func @transform_10(%arg0: i32) -> (i32, i32) {
    %c0_i32 = arith.constant 0 : i32
    %c0_i32_0 = arith.constant 0 : i32
    %c0_i32_1 = arith.constant 0 : i32
    return %c0_i32, %c0_i32_0 : i32, i32
  }
  func.func @transform_11(%arg0: i32) -> (i32, i32) {
    %c0_i32 = arith.constant 0 : i32
    %c0_i32_0 = arith.constant 0 : i32
    %c0_i32_1 = arith.constant 0 : i32
    return %c0_i32, %c0_i32_0 : i32, i32
  }
  func.func @transform_12(%arg0: i32) -> (i32, i32) {
    %c0_i32 = arith.constant 0 : i32
    %c0_i32_0 = arith.constant 0 : i32
    %c0_i32_1 = arith.constant 0 : i32
    return %c0_i32, %c0_i32_0 : i32, i32
  }
  func.func @transform_13(%arg0: i32) -> (i32, i32) {
    %c0_i32 = arith.constant 0 : i32
    %c0_i32_0 = arith.constant 0 : i32
    %c0_i32_1 = arith.constant 0 : i32
    return %c0_i32, %c0_i32_0 : i32, i32
  }
  func.func @transform_14(%arg0: i32) -> (i32, i32) {
    %c0_i32 = arith.constant 0 : i32
    %c0_i32_0 = arith.constant 0 : i32
    %c0_i32_1 = arith.constant 0 : i32
    return %c0_i32, %c0_i32_0 : i32, i32
  }
  func.func @transform_15(%arg0: i32) -> (i32, i32) {
    %c0_i32 = arith.constant 0 : i32
    %c0_i32_0 = arith.constant 0 : i32
    return %arg0, %c0_i32 : i32, i32
  }
}

</mosaic_0001>

<llo_original>
// kernel: tpu_custom_call.1
$region0: #{tpu_custom_call.1}
  #allocation0 [shape = 'u32[]', space=smem, size = 0x4, offset = 0x4, fixed_abs, tag = 'smem constant byte address 0x4 - core index']
  #allocation1 [shape = 'u32[144,128]{1,0:T(1,128)}', space=vmem, size = 0x12000, scoped, tag = 'internal scratch']
  #allocation2 [shape = 'f32[8,8,96]{2,1,0:T(8,128)}', space=vmem, size = 0x8000, scoped, tag = 'scratch operand']
  %s0 = inlined_call_operand.vmem [shape: f32[8,8,4], index: 0, kind: input, shape index: {}]
  %s1 = inlined_call_operand.hbm [shape: f32[4,96], index: 1, kind: input, shape index: {}]
  %s2 = inlined_call_operand.vmem [shape: f32[1,96], index: 2, kind: input, shape index: {}]
  %s3 = inlined_call_operand.vmem [shape: f32[32,96], index: 3, kind: input, shape index: {}]
  %s4 = inlined_call_operand.hbm [shape: f32[1,96], index: 4, kind: input, shape index: {}]
  %s5 = inlined_call_operand.vmem [shape: f32[32,32], index: 5, kind: input, shape index: {}]
  %s6 = inlined_call_operand.hbm [shape: f32[1,32], index: 6, kind: input, shape index: {}]
  %s7 = inlined_call_operand.vmem [shape: f32[32,64], index: 7, kind: input, shape index: {}]
  %s8 = inlined_call_operand.hbm [shape: f32[1,64], index: 8, kind: input, shape index: {}]
  %s9 = inlined_call_operand.vmem [shape: f32[32,32], index: 9, kind: input, shape index: {}]
  %s10 = inlined_call_operand.hbm [shape: f32[1,32], index: 10, kind: input, shape index: {}]
  %s11 = inlined_call_operand.hbm [shape: f32[32,128], index: 11, kind: input, shape index: {}]
  %s12 = inlined_call_operand.vmem [shape: f32[1,128], index: 12, kind: input, shape index: {}]
  %s13 = inlined_call_operand.vmem [shape: f32[32,4], index: 13, kind: input, shape index: {}]
  %s14 = inlined_call_operand.vmem [shape: f32[4,32], index: 14, kind: input, shape index: {}]
  %s15 = inlined_call_operand.hbm [shape: f32[8,128], index: 15, kind: output, shape index: {}]
  %s16 = sld [smem:[#allocation0]]
  $region94: #{tpu_custom_call.1} parent=0
    _
  %s18 = ssub.s32 1, %s16
  %s19 = scalar_select 0, %s18, %s16
  $region1: #{tpu_custom_call.1} parent=0
    #allocation3 [shape = 'u8[2048]{0}', space=vmem, size = 0x800, scoped, tag = 'input window, operand 1, single buffered']
    #allocation4 [shape = 's32[1]{0}', space=sflag, size = 0x4, scoped, tag = 'scoped memory for tpu_custom_call.1']
    #allocation5 [shape = 's32[1]{0}', space=sflag, size = 0x4, scoped, tag = 'scoped memory for tpu_custom_call.1']
    #allocation6 [shape = 'u8[512]{0}', space=vmem, size = 0x400, scoped, tag = 'input window, operand 4, single buffered']
    #allocation7 [shape = 's32[1]{0}', space=sflag, size = 0x4, scoped, tag = 'scoped memory for tpu_custom_call.1']
    #allocation8 [shape = 'u8[512]{0}', space=vmem, size = 0x400, scoped, tag = 'input window, operand 6, single buffered']
    #allocation9 [shape = 'u8[512]{0}', space=vmem, size = 0x400, scoped, tag = 'input window, operand 8, single buffered']
    #allocation10 [shape = 's32[1]{0}', space=sflag, size = 0x4, scoped, tag = 'scoped memory for tpu_custom_call.1']
    #allocation11 [shape = 'u8[512]{0}', space=vmem, size = 0x400, scoped, tag = 'input window, operand 10, single buffered']
    #allocation12 [shape = 'u8[16384]{0}', space=vmem, size = 0x4000, scoped, tag = 'input window, operand 11, single buffered']
    #allocation13 [shape = 's32[1]{0}', space=sflag, size = 0x4, scoped, tag = 'scoped memory for tpu_custom_call.1']
    #allocation14 [shape = 'u8[4096]{0}', space=vmem, size = 0x1000, scoped, tag = 'output window, operand 0, single buffered']
    %20 = vsyncpa [#allocation4], 0
    %21 = vsyncpa [#allocation7], 0
    %22 = vsyncpa [#allocation10], 0
    %23 = vsyncpa [#allocation13], 0
    %24 = vsyncpa [#allocation5], 0
    // Predicated region
    $region2: #{tpu_custom_call.1} parent=1 // pred_check
      _
    $region3: #{tpu_custom_call.1} parent=1 // pred_check_branch
      %26 = sbr.rel (0) target = $region5
    $region4: #{tpu_custom_call.1} parent=1 // pred_region
      _
    $region5: #{tpu_custom_call.1} parent=1 // pred_fallthru
      _
    // Predicated region
    $region6: #{tpu_custom_call.1} parent=1 // pred_check
      _
    $region7: #{tpu_custom_call.1} parent=1 // pred_check_branch
      %28 = sbr.rel (0) target = $region9
    $region8: #{tpu_custom_call.1} parent=1 // pred_region
      %s30 = ssub.s32 64, 64
      %31 = vsyncadd [#allocation4], %s30
      %s33 = sshll.u32 [#allocation3], 4
      %s34 = int_to_ptr.vmem [resolvable:$true] %s33
      %36 = dma.hbm_to_vmem [thread:$0]  %s1, 64, %s34, [#allocation4]
    $region9: #{tpu_custom_call.1} parent=1 // pred_fallthru
      _
    // Predicated region
    $region10: #{tpu_custom_call.1} parent=1 // pred_check
      _
    $region11: #{tpu_custom_call.1} parent=1 // pred_check_branch
      %38 = sbr.rel (0) target = $region13
    $region12: #{tpu_custom_call.1} parent=1 // pred_region
      _
    $region13: #{tpu_custom_call.1} parent=1 // pred_fallthru
      _
    // Predicated region
    $region14: #{tpu_custom_call.1} parent=1 // pred_check
      _
    $region15: #{tpu_custom_call.1} parent=1 // pred_check_branch
      %40 = sbr.rel (0) target = $region17
    $region16: #{tpu_custom_call.1} parent=1 // pred_region
      _
    $region17: #{tpu_custom_call.1} parent=1 // pred_fallthru
      _
    // Predicated region
    $region18: #{tpu_custom_call.1} parent=1 // pred_check
      _
    $region19: #{tpu_custom_call.1} parent=1 // pred_check_branch
      %42 = sbr.rel (0) target = $region21
    $region20: #{tpu_custom_call.1} parent=1 // pred_region
      %s44 = ssub.s32 16, 16
      %45 = vsyncadd [#allocation7], %s44
      %s47 = sshll.u32 [#allocation6], 4
      %s48 = int_to_ptr.vmem [resolvable:$true] %s47
      %50 = dma.hbm_to_vmem [thread:$0]  %s4, 16, %s48, [#allocation7]
    $region21: #{tpu_custom_call.1} parent=1 // pred_fallthru
      _
    // Predicated region
    $region22: #{tpu_custom_call.1} parent=1 // pred_check
      _
    $region23: #{tpu_custom_call.1} parent=1 // pred_check_branch
      %52 = sbr.rel (0) target = $region25
    $region24: #{tpu_custom_call.1} parent=1 // pred_region
      _
    $region25: #{tpu_custom_call.1} parent=1 // pred_fallthru
      _
    // Predicated region
    $region26: #{tpu_custom_call.1} parent=1 // pred_check
      _
    $region27: #{tpu_custom_call.1} parent=1 // pred_check_branch
      %54 = sbr.rel (0) target = $region29
    $region28: #{tpu_custom_call.1} parent=1 // pred_region
      %s56 = ssub.s32 16, 16
      %57 = vsyncadd [#allocation7], %s56
      %s59 = sshll.u32 [#allocation8], 4
      %s60 = int_to_ptr.vmem [resolvable:$true] %s59
      %62 = dma.hbm_to_vmem [thread:$0]  %s6, 16, %s60, [#allocation7]
    $region29: #{tpu_custom_call.1} parent=1 // pred_fallthru
      _
    // Predicated region
    $region30: #{tpu_custom_call.1} parent=1 // pred_check
      _
    $region31: #{tpu_custom_call.1} parent=1 // pred_check_branch
      %64 = sbr.rel (0) target = $region33
    $region32: #{tpu_custom_call.1} parent=1 // pred_region
      _
    $region33: #{tpu_custom_call.1} parent=1 // pred_fallthru
      _
    // Predicated region
    $region34: #{tpu_custom_call.1} parent=1 // pred_check
      _
    $region35: #{tpu_custom_call.1} parent=1 // pred_check_branch
      %66 = sbr.rel (0) target = $region37
    $region36: #{tpu_custom_call.1} parent=1 // pred_region
      %s68 = ssub.s32 16, 16
      %69 = vsyncadd [#allocation10], %s68
      %s71 = sshll.u32 [#allocation9], 4
      %s72 = int_to_ptr.vmem [resolvable:$true] %s71
      %74 = dma.hbm_to_vmem [thread:$0]  %s8, 16, %s72, [#allocation10]
    $region37: #{tpu_custom_call.1} parent=1 // pred_fallthru
      _
    // Predicated region
    $region38: #{tpu_custom_call.1} parent=1 // pred_check
      _
    $region39: #{tpu_custom_call.1} parent=1 // pred_check_branch
      %76 = sbr.rel (0) target = $region41
    $region40: #{tpu_custom_call.1} parent=1 // pred_region
      _
    $region41: #{tpu_custom_call.1} parent=1 // pred_fallthru
      _
    // Predicated region
    $region42: #{tpu_custom_call.1} parent=1 // pred_check
      _
    $region43: #{tpu_custom_call.1} parent=1 // pred_check_branch
      %78 = sbr.rel (0) target = $region45
    $region44: #{tpu_custom_call.1} parent=1 // pred_region
      %s80 = ssub.s32 16, 16
      %81 = vsyncadd [#allocation10], %s80
      %s83 = sshll.u32 [#allocation11], 4
      %s84 = int_to_ptr.vmem [resolvable:$true] %s83
      %86 = dma.hbm_to_vmem [thread:$0]  %s10, 16, %s84, [#allocation10]
    $region45: #{tpu_custom_call.1} parent=1 // pred_fallthru
      _
    // Predicated region
    $region46: #{tpu_custom_call.1} parent=1 // pred_check
      _
    $region47: #{tpu_custom_call.1} parent=1 // pred_check_branch
      %88 = sbr.rel (0) target = $region49
    $region48: #{tpu_custom_call.1} parent=1 // pred_region
      %s90 = ssub.s32 512, 512
      %91 = vsyncadd [#allocation13], %s90
      %s92 = sshll.u32 [#allocation12], 4
      %s93 = int_to_ptr.vmem [resolvable:$true] %s92
      %98 = dma.hbm_to_vmem [thread:$0]  %s11, 512, %s93, [#allocation13], 128, 128, 8
    $region49: #{tpu_custom_call.1} parent=1 // pred_fallthru
      _
    // Predicated region
    $region50: #{tpu_custom_call.1} parent=1 // pred_check
      _
    $region51: #{tpu_custom_call.1} parent=1 // pred_check_branch
      %100 = sbr.rel (0) target = $region53
    $region52: #{tpu_custom_call.1} parent=1 // pred_region
      _
    $region53: #{tpu_custom_call.1} parent=1 // pred_fallthru
      _
    // Predicated region
    $region54: #{tpu_custom_call.1} parent=1 // pred_check
      _
    $region55: #{tpu_custom_call.1} parent=1 // pred_check_branch
      %102 = sbr.rel (0) target = $region57
    $region56: #{tpu_custom_call.1} parent=1 // pred_region
      _
    $region57: #{tpu_custom_call.1} parent=1 // pred_fallthru
      _
    // Predicated region
    $region58: #{tpu_custom_call.1} parent=1 // pred_check
      _
    $region59: #{tpu_custom_call.1} parent=1 // pred_check_branch
      %104 = sbr.rel (0) target = $region61
    $region60: #{tpu_custom_call.1} parent=1 // pred_region
      _
    $region61: #{tpu_custom_call.1} parent=1 // pred_fallthru
      _
    // Predicated region
    $region62: #{tpu_custom_call.1} parent=1 // pred_check
      _
    $region63: #{tpu_custom_call.1} parent=1 // pred_check_branch
      %106 = sbr.rel (0) target = $region65
    $region64: #{tpu_custom_call.1} parent=1 // pred_region
      %107 = dma.done [#allocation4], 64
    $region65: #{tpu_custom_call.1} parent=1 // pred_fallthru
      _
    // Predicated region
    $region66: #{tpu_custom_call.1} parent=1 // pred_check
      _
    $region67: #{tpu_custom_call.1} parent=1 // pred_check_branch
      %109 = sbr.rel (0) target = $region69
    $region68: #{tpu_custom_call.1} parent=1 // pred_region
      %110 = dma.done [#allocation7], 16
    $region69: #{tpu_custom_call.1} parent=1 // pred_fallthru
      _
    // Predicated region
    $region70: #{tpu_custom_call.1} parent=1 // pred_check
      _
    $region71: #{tpu_custom_call.1} parent=1 // pred_check_branch
      %112 = sbr.rel (0) target = $region73
    $region72: #{tpu_custom_call.1} parent=1 // pred_region
      %113 = dma.done [#allocation7], 16
    $region73: #{tpu_custom_call.1} parent=1 // pred_fallthru
      _
    // Predicated region
    $region74: #{tpu_custom_call.1} parent=1 // pred_check
      _
    $region75: #{tpu_custom_call.1} parent=1 // pred_check_branch
      %115 = sbr.rel (0) target = $region77
    $region76: #{tpu_custom_call.1} parent=1 // pred_region
      %116 = dma.done [#allocation10], 16
    $region77: #{tpu_custom_call.1} parent=1 // pred_fallthru
      _
    // Predicated region
    $region78: #{tpu_custom_call.1} parent=1 // pred_check
      _
    $region79: #{tpu_custom_call.1} parent=1 // pred_check_branch
      %118 = sbr.rel (0) target = $region81
    $region80: #{tpu_custom_call.1} parent=1 // pred_region
      %119 = dma.done [#allocation10], 16
    $region81: #{tpu_custom_call.1} parent=1 // pred_fallthru
      _
    // Predicated region
    $region82: #{tpu_custom_call.1} parent=1 // pred_check
      _
    $region83: #{tpu_custom_call.1} parent=1 // pred_check_branch
      %121 = sbr.rel (0) target = $region85
    $region84: #{tpu_custom_call.1} parent=1 // pred_region
      %122 = dma.done [#allocation13], 512
    $region85: #{tpu_custom_call.1} parent=1 // pred_fallthru
      _
    %v123 = vld [vmem:[%s0] sm:$0xff]
    %v124 = vld [vmem:[%s0 + $0x8] sm:$0xff]
    %v125 = vld [vmem:[%s0 + $0x10] sm:$0xff]
    %v126 = vld [vmem:[%s0 + $0x18] sm:$0xff]
    %v127 = vld [vmem:[%s0 + $0x20] sm:$0xff]
    %v128 = vld [vmem:[%s0 + $0x28] sm:$0xff]
    %v129 = vld [vmem:[%s0 + $0x30] sm:$0xff]
    %v130 = vld [vmem:[%s0 + $0x38] sm:$0xff]
    %v131 = vld [vmem:[#allocation3] sm:$0xf]
    %v132 = vld [vmem:[%s2] sm:$0x1]
    %v134 = vlaneseq
    %v135 = vshrl.u32 %v134, 7
    %v136 = vsub.s32 0, %v135
    %v137 = vrot.slane %v132, %v136
    %vm139 = vcmask 31744
    %v141 = vsel %vm139, %v123, 0
    %v144 = vsel %vm139, %v124, 0
    %v147 = vsel %vm139, %v125, 0
    %v150 = vsel %vm139, %v126, 0
    %v153 = vsel %vm139, %v127, 0
    %v156 = vsel %vm139, %v128, 0
    %v159 = vsel %vm139, %v129, 0
    %v162 = vsel %vm139, %v130, 0
    %vm164 = vcmask 1043456
    %v166 = vsel %vm164, %v131, 0
    %168 = vmatprep.subr.mxu0 0.0
    %169 = vmatpush1.msra.mxu0 %v166
    %170 = vmatprep.subr.mxu0 0.0
    %171 = vmatpush1.msra.mxu0 0.0
    %172 = vmatprep.subr.mxu0 0.0
    %173 = vmatpush1.msra.mxu0 0.0
    %174 = vmatprep.subr.mxu0 0.0
    %175 = vmatpush1.msra.mxu0 0.0
    %176 = vmatprep.subr.mxu0 0.0
    %177 = vmatpush1.msra.mxu0 0.0
    %178 = vmatprep.subr.mxu0 0.0
    %179 = vmatpush1.msra.mxu0 0.0
    %180 = vmatprep.subr.mxu0 0.0
    %181 = vmatpush1.msra.mxu0 0.0
    %182 = vmatprep.subr.mxu0 0.0
    %183 = vmatpush1.msra.mxu0 0.0
    %184 = vmatprep.subr.mxu0 0.0
    %185 = vmatpush1.msra.mxu0 0.0
    %186 = vmatprep.subr.mxu0 0.0
    %187 = vmatpush1.msra.mxu0 0.0
    %188 = vmatprep.subr.mxu0 0.0
    %189 = vmatpush1.msra.mxu0 0.0
    %190 = vmatprep.subr.mxu0 0.0
    %191 = vmatpush1.msra.mxu0 0.0
    %192 = vmatprep.subr.mxu0 0.0
    %193 = vmatpush1.msra.mxu0 0.0
    %194 = vmatprep.subr.mxu0 0.0
    %195 = vmatpush1.msra.mxu0 0.0
    %196 = vmatprep.subr.mxu0 0.0
    %197 = vmatpush1.msra.mxu0 0.0
    %198 = vmatprep.subr.mxu0 0.0
    %199 = vmatpush1.msra.mxu0 0.0
    %200 = vmatprep.subr.mxu0 0.0
    %201 = vmatpush1.msra.mxu0 0.0
    %202 = vmatprep.subr.mxu0 0.0
    %203 = vmatpush1.msra.mxu0 0.0
    %204 = vmatprep.subr.mxu0 0.0
    %205 = vmatpush1.msra.mxu0 0.0
    %206 = vmatprep.subr.mxu0 0.0
    %207 = vmatpush1.msra.mxu0 0.0
    %208 = vmatprep.subr.mxu0 0.0
    %209 = vmatpush1.msra.mxu0 0.0
    %210 = vmatprep.subr.mxu0 0.0
    %211 = vmatpush1.msra.mxu0 0.0
    %212 = vmatprep.subr.mxu0 0.0
    %213 = vmatpush1.msra.mxu0 0.0
    %214 = vmatprep.subr.mxu0 0.0
    %215 = vmatpush1.msra.mxu0 0.0
    %216 = vmatprep.subr.mxu0 0.0
    %217 = vmatpush1.msra.mxu0 0.0
    %218 = vmatprep.subr.mxu0 0.0
    %219 = vmatpush1.msra.mxu0 0.0
    %220 = vmatprep.subr.mxu0 0.0
    %221 = vmatpush1.msra.mxu0 0.0
    %222 = vmatprep.subr.mxu0 0.0
    %223 = vmatpush1.msra.mxu0 0.0
    %224 = vmatprep.subr.mxu0 0.0
    %225 = vmatpush1.msra.mxu0 0.0
    %226 = vmatprep.subr.mxu0 0.0
    %227 = vmatpush1.msra.mxu0 0.0
    %228 = vmatprep.subr.mxu0 0.0
    %229 = vmatpush1.msra.mxu0 0.0
    %230 = vmatprep.subr.mxu0 0.0
    %231 = vmatpush1.msra.mxu0 0.0
    %232 = vmatprep.mubr.f32.mxu0 0.0
    %233 = vmatmul.mubr.f32.gmra.mrb[0].mxu0 %v141
    %v234 = vpop.f32.mrb[0].mxu0
    %v235 = vadd.f32 %v137, %v234
    %v236 = vpop.f32.mrb[0].mxu0
    %237 = vmatprep.mubr.f32.mxu0 0.0
    %238 = vmatmul.mubr.f32.gmra.mrb[0].mxu0 %v144
    %v239 = vpop.f32.mrb[0].mxu0
    %v240 = vadd.f32 %v137, %v239
    %v241 = vpop.f32.mrb[0].mxu0
    %242 = vmatprep.mubr.f32.mxu0 0.0
    %243 = vmatmul.mubr.f32.gmra.mrb[0].mxu0 %v147
    %v244 = vpop.f32.mrb[0].mxu0
    %v245 = vadd.f32 %v137, %v244
    %v246 = vpop.f32.mrb[0].mxu0
    %247 = vmatprep.mubr.f32.mxu0 0.0
    %248 = vmatmul.mubr.f32.gmra.mrb[0].mxu0 %v150
    %v249 = vpop.f32.mrb[0].mxu0
    %v250 = vadd.f32 %v137, %v249
    %v251 = vpop.f32.mrb[0].mxu0
    %252 = vmatprep.mubr.f32.mxu0 0.0
    %253 = vmatmul.mubr.f32.gmra.mrb[0].mxu0 %v153
    %v254 = vpop.f32.mrb[0].mxu0
    %v255 = vadd.f32 %v137, %v254
    %v256 = vpop.f32.mrb[0].mxu0
    %257 = vmatprep.mubr.f32.mxu0 0.0
    %258 = vmatmul.mubr.f32.gmra.mrb[0].mxu0 %v156
    %v259 = vpop.f32.mrb[0].mxu0
    %v260 = vadd.f32 %v137, %v259
    %v261 = vpop.f32.mrb[0].mxu0
    %262 = vmatprep.mubr.f32.mxu0 0.0
    %263 = vmatmul.mubr.f32.gmra.mrb[0].mxu0 %v159
    %v264 = vpop.f32.mrb[0].mxu0
    %v265 = vadd.f32 %v137, %v264
    %v266 = vpop.f32.mrb[0].mxu0
    %267 = vmatprep.mubr.f32.mxu0 0.0
    %268 = vmatmul.mubr.f32.gmra.mrb[0].mxu0 %v162
    %v269 = vpop.f32.mrb[0].mxu0
    %v270 = vadd.f32 %v137, %v269
    %v271 = vpop.f32.mrb[0].mxu0
    %272 = vdwg.mxu0
    %vm273 = vcmask 785408
    %274 = vst.msk [vmem:[#allocation2] sm:$0xff] %vm273, %v235
    %275 = vst.msk [vmem:[#allocation2 + $0x8] sm:$0xff] %vm273, %v240
    %276 = vst.msk [vmem:[#allocation2 + $0x10] sm:$0xff] %vm273, %v245
    %277 = vst.msk [vmem:[#allocation2 + $0x18] sm:$0xff] %vm273, %v250
    %278 = vst.msk [vmem:[#allocation2 + $0x20] sm:$0xff] %vm273, %v255
    %279 = vst.msk [vmem:[#allocation2 + $0x28] sm:$0xff] %vm273, %v260
    %280 = vst.msk [vmem:[#allocation2 + $0x30] sm:$0xff] %vm273, %v265
    %281 = vst.msk [vmem:[#allocation2 + $0x38] sm:$0xff] %vm273, %v270
    %v282 = vld [vmem:[%s3] sm:$0xff]
    %v283 = vld [vmem:[%s3 + $0x8] sm:$0xff]
    %v284 = vld [vmem:[%s3 + $0x10] sm:$0xff]
    %v285 = vld [vmem:[%s3 + $0x18] sm:$0xff]
    %v286 = vld [vmem:[#allocation6] sm:$0x1]
    %v288 = vlaneseq
    %v289 = vshrl.u32 %v288, 7
    %v290 = vsub.s32 0, %v289
    %v291 = vrot.slane %v286, %v290
    %v293 = vld [vmem:[#allocation2] sm:$0xff]
    %vm294 = vcmask 261120
    %v296 = vsel %vm294, 0.0, 0
    %298 = vmatprep.subr.mxu0 0.0
    %299 = vmatpush1.msra.mxu0 %v282
    %300 = vmatprep.subr.mxu0 0.0
    %301 = vmatpush1.msra.mxu0 %v283
    %302 = vmatprep.subr.mxu0 0.0
    %303 = vmatpush1.msra.mxu0 %v284
    %304 = vmatprep.subr.mxu0 0.0
    %305 = vmatpush1.msra.mxu0 %v285
    %306 = vmatprep.subr.mxu0 0.0
    %307 = vmatpush1.msra.mxu0 0.0
    %308 = vmatprep.subr.mxu0 0.0
    %309 = vmatpush1.msra.mxu0 0.0
    %310 = vmatprep.subr.mxu0 0.0
    %311 = vmatpush1.msra.mxu0 0.0
    %312 = vmatprep.subr.mxu0 0.0
    %313 = vmatpush1.msra.mxu0 0.0
    %314 = vmatprep.subr.mxu0 0.0
    %315 = vmatpush1.msra.mxu0 0.0
    %316 = vmatprep.subr.mxu0 0.0
    %317 = vmatpush1.msra.mxu0 0.0
    %318 = vmatprep.subr.mxu0 0.0
    %319 = vmatpush1.msra.mxu0 0.0
    %320 = vmatprep.subr.mxu0 0.0
    %321 = vmatpush1.msra.mxu0 0.0
    %322 = vmatprep.subr.mxu0 0.0
    %323 = vmatpush1.msra.mxu0 0.0
    %324 = vmatprep.subr.mxu0 0.0
    %325 = vmatpush1.msra.mxu0 0.0
    %326 = vmatprep.subr.mxu0 0.0
    %327 = vmatpush1.msra.mxu0 0.0
    %328 = vmatprep.subr.mxu0 0.0
    %329 = vmatpush1.msra.mxu0 0.0
    %330 = vmatprep.subr.mxu0 0.0
    %331 = vmatpush1.msra.mxu0 0.0
    %332 = vmatprep.subr.mxu0 0.0
    %333 = vmatpush1.msra.mxu0 0.0
    %334 = vmatprep.subr.mxu0 0.0
    %335 = vmatpush1.msra.mxu0 0.0
    %336 = vmatprep.subr.mxu0 0.0
    %337 = vmatpush1.msra.mxu0 0.0
    %338 = vmatprep.subr.mxu0 0.0
    %339 = vmatpush1.msra.mxu0 0.0
    %340 = vmatprep.subr.mxu0 0.0
    %341 = vmatpush1.msra.mxu0 0.0
    %342 = vmatprep.subr.mxu0 0.0
    %343 = vmatpush1.msra.mxu0 0.0
    %344 = vmatprep.subr.mxu0 0.0
    %345 = vmatpush1.msra.mxu0 0.0
    %346 = vmatprep.subr.mxu0 0.0
    %347 = vmatpush1.msra.mxu0 0.0
    %348 = vmatprep.subr.mxu0 0.0
    %349 = vmatpush1.msra.mxu0 0.0
    %350 = vmatprep.subr.mxu0 0.0
    %351 = vmatpush1.msra.mxu0 0.0
    %352 = vmatprep.subr.mxu0 0.0
    %353 = vmatpush1.msra.mxu0 0.0
    %354 = vmatprep.subr.mxu0 0.0
    %355 = vmatpush1.msra.mxu0 0.0
    %356 = vmatprep.subr.mxu0 0.0
    %357 = vmatpush1.msra.mxu0 0.0
    %358 = vmatprep.subr.mxu0 0.0
    %359 = vmatpush1.msra.mxu0 0.0
    %360 = vmatprep.subr.mxu0 0.0
    %361 = vmatpush1.msra.mxu0 0.0
    %362 = vmatprep.mubr.f32.mxu0 0.0
    %363 = vmatmul.mubr.f32.gmra.mrb[0].mxu0 %v296
    %v364 = vpop.f32.mrb[0].mxu0
    %v365 = vadd.f32 %v291, %v364
    %v366 = vpop.f32.mrb[0].mxu0
    %367 = vdwg.mxu0
    %v368 = vadd.f32 %v293, %v365
    %v369 = vxor.u32 %v368, 2147483648
    %v370 = vmul.f32 %v369, 1.442695
    %v371 = vpow.pop %v370
    %v372 = vadd.f32 %v371, 1.0
    %v373 = vrcp.pop %v372
    %v374 = vmul.f32 1.0, %v373
    %376 = vrot.lane.b32.xlu0 %v365, 64
    %v377 = vpop.permute.xlu0 %376
    %v379 = vmul.f32 %v374, %v377
    %381 = vrot.lane.b32.xlu0 %v379, 64
    %v382 = vpop.permute.xlu0 %381
    %v384 = vadd.f32 %v293, %v382
    %v385 = vtanh.pop %v384
    %v386 = vsub.f32 1.0, %v374
    %388 = vrot.lane.b32.xlu0 %v385, 96
    %v389 = vpop.permute.xlu0 %388
    %v391 = vmul.f32 %v386, %v389
    %v392 = vmul.f32 %v374, 0.0
    %v393 = vadd.f32 %v391, %v392
    %395 = vrot.lane.b32.xlu0 %v393, 96
    %v396 = vpop.permute.xlu0 %395
    %398 = vst.msk [vmem:[#allocation2] sm:$0xff] %vm294, %v396
    %s399 = scalar_lea.vmem [#allocation2], 8
    %v400 = vld [vmem:[%s399] sm:$0xff]
    %v401 = vsel %vm294, %v396, 0
    %403 = vmatprep.subr.mxu0 0.0
    %404 = vmatpush1.msra.mxu0 %v282
    %405 = vmatprep.subr.mxu0 0.0
    %406 = vmatpush1.msra.mxu0 %v283
    %407 = vmatprep.subr.mxu0 0.0
    %408 = vmatpush1.msra.mxu0 %v284
    %409 = vmatprep.subr.mxu0 0.0
    %410 = vmatpush1.msra.mxu0 %v285
    %411 = vmatprep.subr.mxu0 0.0
    %412 = vmatpush1.msra.mxu0 0.0
    %413 = vmatprep.subr.mxu0 0.0
    %414 = vmatpush1.msra.mxu0 0.0
    %415 = vmatprep.subr.mxu0 0.0
    %416 = vmatpush1.msra.mxu0 0.0
    %417 = vmatprep.subr.mxu0 0.0
    %418 = vmatpush1.msra.mxu0 0.0
    %419 = vmatprep.subr.mxu0 0.0
    %420 = vmatpush1.msra.mxu0 0.0
    %421 = vmatprep.subr.mxu0 0.0
    %422 = vmatpush1.msra.mxu0 0.0
    %423 = vmatprep.subr.mxu0 0.0
    %424 = vmatpush1.msra.mxu0 0.0
    %425 = vmatprep.subr.mxu0 0.0
    %426 = vmatpush1.msra.mxu0 0.0
    %427 = vmatprep.subr.mxu0 0.0
    %428 = vmatpush1.msra.mxu0 0.0
    %429 = vmatprep.subr.mxu0 0.0
    %430 = vmatpush1.msra.mxu0 0.0
    %431 = vmatprep.subr.mxu0 0.0
    %432 = vmatpush1.msra.mxu0 0.0
    %433 = vmatprep.subr.mxu0 0.0
    %434 = vmatpush1.msra.mxu0 0.0
    %435 = vmatprep.subr.mxu0 0.0
    %436 = vmatpush1.msra.mxu0 0.0
    %437 = vmatprep.subr.mxu0 0.0
    %438 = vmatpush1.msra.mxu0 0.0
    %439 = vmatprep.subr.mxu0 0.0
    %440 = vmatpush1.msra.mxu0 0.0
    %441 = vmatprep.subr.mxu0 0.0
    %442 = vmatpush1.msra.mxu0 0.0
    %443 = vmatprep.subr.mxu0 0.0
    %444 = vmatpush1.msra.mxu0 0.0
    %445 = vmatprep.subr.mxu0 0.0
    %446 = vmatpush1.msra.mxu0 0.0
    %447 = vmatprep.subr.mxu0 0.0
    %448 = vmatpush1.msra.mxu0 0.0
    %449 = vmatprep.subr.mxu0 0.0
    %450 = vmatpush1.msra.mxu0 0.0
    %451 = vmatprep.subr.mxu0 0.0
    %452 = vmatpush1.msra.mxu0 0.0
    %453 = vmatprep.subr.mxu0 0.0
    %454 = vmatpush1.msra.mxu0 0.0
    %455 = vmatprep.subr.mxu0 0.0
    %456 = vmatpush1.msra.mxu0 0.0
    %457 = vmatprep.subr.mxu0 0.0
    %458 = vmatpush1.msra.mxu0 0.0
    %459 = vmatprep.subr.mxu0 0.0
    %460 = vmatpush1.msra.mxu0 0.0
    %461 = vmatprep.subr.mxu0 0.0
    %462 = vmatpush1.msra.mxu0 0.0
    %463 = vmatprep.subr.mxu0 0.0
    %464 = vmatpush1.msra.mxu0 0.0
    %465 = vmatprep.subr.mxu0 0.0
    %466 = vmatpush1.msra.mxu0 0.0
    %467 = vmatprep.mubr.f32.mxu0 0.0
    %468 = vmatmul.mubr.f32.gmra.mrb[0].mxu0 %v401
    %v469 = vpop.f32.mrb[0].mxu0
    %v470 = vadd.f32 %v291, %v469
    %v471 = vpop.f32.mrb[0].mxu0
    %472 = vdwg.mxu0
    %v473 = vadd.f32 %v400, %v470
    %v474 = vxor.u32 %v473, 2147483648
    %v475 = vmul.f32 %v474, 1.442695
    %v476 = vpow.pop %v475
    %v477 = vadd.f32 %v476, 1.0
    %v478 = vrcp.pop %v477
    %v479 = vmul.f32 1.0, %v478
    %481 = vrot.lane.b32.xlu0 %v470, 64
    %v482 = vpop.permute.xlu0 %481
    %v484 = vmul.f32 %v479, %v482
    %486 = vrot.lane.b32.xlu0 %v484, 64
    %v487 = vpop.permute.xlu0 %486
    %v489 = vadd.f32 %v400, %v487
    %v490 = vtanh.pop %v489
    %v491 = vsub.f32 1.0, %v479
    %493 = vrot.lane.b32.xlu0 %v490, 96
    %v494 = vpop.permute.xlu0 %493
    %v496 = vmul.f32 %v491, %v494
    %v497 = vmul.f32 %v479, %v393
    %v498 = vadd.f32 %v496, %v497
    %500 = vrot.lane.b32.xlu0 %v498, 96
    %v501 = vpop.permute.xlu0 %500
    %503 = vst.msk [vmem:[%s399] sm:$0xff] %vm294, %v501
    %s504 = scalar_lea.vmem [#allocation2], 16
    %v505 = vld [vmem:[%s504] sm:$0xff]
    %v506 = vsel %vm294, %v501, 0
    %508 = vmatprep.subr.mxu0 0.0
    %509 = vmatpush1.msra.mxu0 %v282
    %510 = vmatprep.subr.mxu0 0.0
    %511 = vmatpush1.msra.mxu0 %v283
    %512 = vmatprep.subr.mxu0 0.0
    %513 = vmatpush1.msra.mxu0 %v284
    %514 = vmatprep.subr.mxu0 0.0
    %515 = vmatpush1.msra.mxu0 %v285
    %516 = vmatprep.subr.mxu0 0.0
    %517 = vmatpush1.msra.mxu0 0.0
    %518 = vmatprep.subr.mxu0 0.0
    %519 = vmatpush1.msra.mxu0 0.0
    %520 = vmatprep.subr.mxu0 0.0
    %521 = vmatpush1.msra.mxu0 0.0
    %522 = vmatprep.subr.mxu0 0.0
    %523 = vmatpush1.msra.mxu0 0.0
    %524 = vmatprep.subr.mxu0 0.0
    %525 = vmatpush1.msra.mxu0 0.0
    %526 = vmatprep.subr.mxu0 0.0
    %527 = vmatpush1.msra.mxu0 0.0
    %528 = vmatprep.subr.mxu0 0.0
    %529 = vmatpush1.msra.mxu0 0.0
    %530 = vmatprep.subr.mxu0 0.0
    %531 = vmatpush1.msra.mxu0 0.0
    %532 = vmatprep.subr.mxu0 0.0
    %533 = vmatpush1.msra.mxu0 0.0
    %534 = vmatprep.subr.mxu0 0.0
    %535 = vmatpush1.msra.mxu0 0.0
    %536 = vmatprep.subr.mxu0 0.0
    %537 = vmatpush1.msra.mxu0 0.0
    %538 = vmatprep.subr.mxu0 0.0
    %539 = vmatpush1.msra.mxu0 0.0
    %540 = vmatprep.subr.mxu0 0.0
    %541 = vmatpush1.msra.mxu0 0.0
    %542 = vmatprep.subr.mxu0 0.0
    %543 = vmatpush1.msra.mxu0 0.0
    %544 = vmatprep.subr.mxu0 0.0
    %545 = vmatpush1.msra.mxu0 0.0
    %546 = vmatprep.subr.mxu0 0.0
    %547 = vmatpush1.msra.mxu0 0.0
    %548 = vmatprep.subr.mxu0 0.0
    %549 = vmatpush1.msra.mxu0 0.0
    %550 = vmatprep.subr.mxu0 0.0
    %551 = vmatpush1.msra.mxu0 0.0
    %552 = vmatprep.subr.mxu0 0.0
    %553 = vmatpush1.msra.mxu0 0.0
    %554 = vmatprep.subr.mxu0 0.0
    %555 = vmatpush1.msra.mxu0 0.0
    %556 = vmatprep.subr.mxu0 0.0
    %557 = vmatpush1.msra.mxu0 0.0
    %558 = vmatprep.subr.mxu0 0.0
    %559 = vmatpush1.msra.mxu0 0.0
    %560 = vmatprep.subr.mxu0 0.0
    %561 = vmatpush1.msra.mxu0 0.0
    %562 = vmatprep.subr.mxu0 0.0
    %563 = vmatpush1.msra.mxu0 0.0
    %564 = vmatprep.subr.mxu0 0.0
    %565 = vmatpush1.msra.mxu0 0.0
    %566 = vmatprep.subr.mxu0 0.0
    %567 = vmatpush1.msra.mxu0 0.0
    %568 = vmatprep.subr.mxu0 0.0
    %569 = vmatpush1.msra.mxu0 0.0
    %570 = vmatprep.subr.mxu0 0.0
    %571 = vmatpush1.msra.mxu0 0.0
    %572 = vmatprep.mubr.f32.mxu0 0.0
    %573 = vmatmul.mubr.f32.gmra.mrb[0].mxu0 %v506
    %v574 = vpop.f32.mrb[0].mxu0
    %v575 = vadd.f32 %v291, %v574
    %v576 = vpop.f32.mrb[0].mxu0
    %577 = vdwg.mxu0
    %v578 = vadd.f32 %v505, %v575
    %v579 = vxor.u32 %v578, 2147483648
    %v580 = vmul.f32 %v579, 1.442695
    %v581 = vpow.pop %v580
    %v582 = vadd.f32 %v581, 1.0
    %v583 = vrcp.pop %v582
    %v584 = vmul.f32 1.0, %v583
    %586 = vrot.lane.b32.xlu0 %v575, 64
    %v587 = vpop.permute.xlu0 %586
    %v589 = vmul.f32 %v584, %v587
    %591 = vrot.lane.b32.xlu0 %v589, 64
    %v592 = vpop.permute.xlu0 %591
    %v594 = vadd.f32 %v505, %v592
    %v595 = vtanh.pop %v594
    %v596 = vsub.f32 1.0, %v584
    %598 = vrot.lane.b32.xlu0 %v595, 96
    %v599 = vpop.permute.xlu0 %598
    %v601 = vmul.f32 %v596, %v599
    %v602 = vmul.f32 %v584, %v498
    %v603 = vadd.f32 %v601, %v602
    %605 = vrot.lane.b32.xlu0 %v603, 96
    %v606 = vpop.permute.xlu0 %605
    %608 = vst.msk [vmem:[%s504] sm:$0xff] %vm294, %v606
    %s609 = scalar_lea.vmem [#allocation2], 24
    %v610 = vld [vmem:[%s609] sm:$0xff]
    %v611 = vsel %vm294, %v606, 0
    %613 = vmatprep.subr.mxu0 0.0
    %614 = vmatpush1.msra.mxu0 %v282
    %615 = vmatprep.subr.mxu0 0.0
    %616 = vmatpush1.msra.mxu0 %v283
    %617 = vmatprep.subr.mxu0 0.0
    %618 = vmatpush1.msra.mxu0 %v284
    %619 = vmatprep.subr.mxu0 0.0
    %620 = vmatpush1.msra.mxu0 %v285
    %621 = vmatprep.subr.mxu0 0.0
    %622 = vmatpush1.msra.mxu0 0.0
    %623 = vmatprep.subr.mxu0 0.0
    %624 = vmatpush1.msra.mxu0 0.0
    %625 = vmatprep.subr.mxu0 0.0
    %626 = vmatpush1.msra.mxu0 0.0
    %627 = vmatprep.subr.mxu0 0.0
    %628 = vmatpush1.msra.mxu0 0.0
    %629 = vmatprep.subr.mxu0 0.0
    %630 = vmatpush1.msra.mxu0 0.0
    %631 = vmatprep.subr.mxu0 0.0
    %632 = vmatpush1.msra.mxu0 0.0
    %633 = vmatprep.subr.mxu0 0.0
    %634 = vmatpush1.msra.mxu0 0.0
    %635 = vmatprep.subr.mxu0 0.0
    %636 = vmatpush1.msra.mxu0 0.0
    %637 = vmatprep.subr.mxu0 0.0
    %638 = vmatpush1.msra.mxu0 0.0
    %639 = vmatprep.subr.mxu0 0.0
    %640 = vmatpush1.msra.mxu0 0.0
    %641 = vmatprep.subr.mxu0 0.0
    %642 = vmatpush1.msra.mxu0 0.0
    %643 = vmatprep.subr.mxu0 0.0
    %644 = vmatpush1.msra.mxu0 0.0
    %645 = vmatprep.subr.mxu0 0.0
    %646 = vmatpush1.msra.mxu0 0.0
    %647 = vmatprep.subr.mxu0 0.0
    %648 = vmatpush1.msra.mxu0 0.0
    %649 = vmatprep.subr.mxu0 0.0
    %650 = vmatpush1.msra.mxu0 0.0
    %651 = vmatprep.subr.mxu0 0.0
    %652 = vmatpush1.msra.mxu0 0.0
    %653 = vmatprep.subr.mxu0 0.0
    %654 = vmatpush1.msra.mxu0 0.0
    %655 = vmatprep.subr.mxu0 0.0
    %656 = vmatpush1.msra.mxu0 0.0
    %657 = vmatprep.subr.mxu0 0.0
    %658 = vmatpush1.msra.mxu0 0.0
    %659 = vmatprep.subr.mxu0 0.0
    %660 = vmatpush1.msra.mxu0 0.0
    %661 = vmatprep.subr.mxu0 0.0
    %662 = vmatpush1.msra.mxu0 0.0
    %663 = vmatprep.subr.mxu0 0.0
    %664 = vmatpush1.msra.mxu0 0.0
    %665 = vmatprep.subr.mxu0 0.0
    %666 = vmatpush1.msra.mxu0 0.0
    %667 = vmatprep.subr.mxu0 0.0
    %668 = vmatpush1.msra.mxu0 0.0
    %669 = vmatprep.subr.mxu0 0.0
    %670 = vmatpush1.msra.mxu0 0.0
    %671 = vmatprep.subr.mxu0 0.0
    %672 = vmatpush1.msra.mxu0 0.0
    %673 = vmatprep.subr.mxu0 0.0
    %674 = vmatpush1.msra.mxu0 0.0
    %675 = vmatprep.subr.mxu0 0.0
    %676 = vmatpush1.msra.mxu0 0.0
    %677 = vmatprep.mubr.f32.mxu0 0.0
    %678 = vmatmul.mubr.f32.gmra.mrb[0].mxu0 %v611
    %v679 = vpop.f32.mrb[0].mxu0
    %v680 = vadd.f32 %v291, %v679
    %v681 = vpop.f32.mrb[0].mxu0
    %682 = vdwg.mxu0
    %v683 = vadd.f32 %v610, %v680
    %v684 = vxor.u32 %v683, 2147483648
    %v685 = vmul.f32 %v684, 1.442695
    %v686 = vpow.pop %v685
    %v687 = vadd.f32 %v686, 1.0
    %v688 = vrcp.pop %v687
    %v689 = vmul.f32 1.0, %v688
    %691 = vrot.lane.b32.xlu0 %v680, 64
    %v692 = vpop.permute.xlu0 %691
    %v694 = vmul.f32 %v689, %v692
    %696 = vrot.lane.b32.xlu0 %v694, 64
    %v697 = vpop.permute.xlu0 %696
    %v699 = vadd.f32 %v610, %v697
    %v700 = vtanh.pop %v699
    %v701 = vsub.f32 1.0, %v689
    %703 = vrot.lane.b32.xlu0 %v700, 96
    %v704 = vpop.permute.xlu0 %703
    %v706 = vmul.f32 %v701, %v704
    %v707 = vmul.f32 %v689, %v603
    %v708 = vadd.f32 %v706, %v707
    %710 = vrot.lane.b32.xlu0 %v708, 96
    %v711 = vpop.permute.xlu0 %710
    %713 = vst.msk [vmem:[%s609] sm:$0xff] %vm294, %v711
    %s714 = scalar_lea.vmem [#allocation2], 32
    %v715 = vld [vmem:[%s714] sm:$0xff]
    %v716 = vsel %vm294, %v711, 0
    %718 = vmatprep.subr.mxu0 0.0
    %719 = vmatpush1.msra.mxu0 %v282
    %720 = vmatprep.subr.mxu0 0.0
    %721 = vmatpush1.msra.mxu0 %v283
    %722 = vmatprep.subr.mxu0 0.0
    %723 = vmatpush1.msra.mxu0 %v284
    %724 = vmatprep.subr.mxu0 0.0
    %725 = vmatpush1.msra.mxu0 %v285
    %726 = vmatprep.subr.mxu0 0.0
    %727 = vmatpush1.msra.mxu0 0.0
    %728 = vmatprep.subr.mxu0 0.0
    %729 = vmatpush1.msra.mxu0 0.0
    %730 = vmatprep.subr.mxu0 0.0
    %731 = vmatpush1.msra.mxu0 0.0
    %732 = vmatprep.subr.mxu0 0.0
    %733 = vmatpush1.msra.mxu0 0.0
    %734 = vmatprep.subr.mxu0 0.0
    %735 = vmatpush1.msra.mxu0 0.0
    %736 = vmatprep.subr.mxu0 0.0
    %737 = vmatpush1.msra.mxu0 0.0
    %738 = vmatprep.subr.mxu0 0.0
    %739 = vmatpush1.msra.mxu0 0.0
    %740 = vmatprep.subr.mxu0 0.0
    %741 = vmatpush1.msra.mxu0 0.0
    %742 = vmatprep.subr.mxu0 0.0
    %743 = vmatpush1.msra.mxu0 0.0
    %744 = vmatprep.subr.mxu0 0.0
    %745 = vmatpush1.msra.mxu0 0.0
    %746 = vmatprep.subr.mxu0 0.0
    %747 = vmatpush1.msra.mxu0 0.0
    %748 = vmatprep.subr.mxu0 0.0
    %749 = vmatpush1.msra.mxu0 0.0
    %750 = vmatprep.subr.mxu0 0.0
    %751 = vmatpush1.msra.mxu0 0.0
    %752 = vmatprep.subr.mxu0 0.0
    %753 = vmatpush1.msra.mxu0 0.0
    %754 = vmatprep.subr.mxu0 0.0
    %755 = vmatpush1.msra.mxu0 0.0
    %756 = vmatprep.subr.mxu0 0.0
    %757 = vmatpush1.msra.mxu0 0.0
    %758 = vmatprep.subr.mxu0 0.0
    %759 = vmatpush1.msra.mxu0 0.0
    %760 = vmatprep.subr.mxu0 0.0
    %761 = vmatpush1.msra.mxu0 0.0
    %762 = vmatprep.subr.mxu0 0.0
    %763 = vmatpush1.msra.mxu0 0.0
    %764 = vmatprep.subr.mxu0 0.0
    %765 = vmatpush1.msra.mxu0 0.0
    %766 = vmatprep.subr.mxu0 0.0
    %767 = vmatpush1.msra.mxu0 0.0
    %768 = vmatprep.subr.mxu0 0.0
    %769 = vmatpush1.msra.mxu0 0.0
    %770 = vmatprep.subr.mxu0 0.0
    %771 = vmatpush1.msra.mxu0 0.0
    %772 = vmatprep.subr.mxu0 0.0
    %773 = vmatpush1.msra.mxu0 0.0
    %774 = vmatprep.subr.mxu0 0.0
    %775 = vmatpush1.msra.mxu0 0.0
    %776 = vmatprep.subr.mxu0 0.0
    %777 = vmatpush1.msra.mxu0 0.0
    %778 = vmatprep.subr.mxu0 0.0
    %779 = vmatpush1.msra.mxu0 0.0
    %780 = vmatprep.subr.mxu0 0.0
    %781 = vmatpush1.msra.mxu0 0.0
    %782 = vmatprep.mubr.f32.mxu0 0.0
    %783 = vmatmul.mubr.f32.gmra.mrb[0].mxu0 %v716
    %v784 = vpop.f32.mrb[0].mxu0
    %v785 = vadd.f32 %v291, %v784
    %v786 = vpop.f32.mrb[0].mxu0
    %787 = vdwg.mxu0
    %v788 = vadd.f32 %v715, %v785
    %v789 = vxor.u32 %v788, 2147483648
    %v790 = vmul.f32 %v789, 1.442695
    %v791 = vpow.pop %v790
    %v792 = vadd.f32 %v791, 1.0
    %v793 = vrcp.pop %v792
    %v794 = vmul.f32 1.0, %v793
    %796 = vrot.lane.b32.xlu0 %v785, 64
    %v797 = vpop.permute.xlu0 %796
    %v799 = vmul.f32 %v794, %v797
    %801 = vrot.lane.b32.xlu0 %v799, 64
    %v802 = vpop.permute.xlu0 %801
    %v804 = vadd.f32 %v715, %v802
    %v805 = vtanh.pop %v804
    %v806 = vsub.f32 1.0, %v794
    %808 = vrot.lane.b32.xlu0 %v805, 96
    %v809 = vpop.permute.xlu0 %808
    %v811 = vmul.f32 %v806, %v809
    %v812 = vmul.f32 %v794, %v708
    %v813 = vadd.f32 %v811, %v812
    %815 = vrot.lane.b32.xlu0 %v813, 96
    %v816 = vpop.permute.xlu0 %815
    %818 = vst.msk [vmem:[%s714] sm:$0xff] %vm294, %v816
    %s819 = scalar_lea.vmem [#allocation2], 40
    %v820 = vld [vmem:[%s819] sm:$0xff]
    %v821 = vsel %vm294, %v816, 0
    %823 = vmatprep.subr.mxu0 0.0
    %824 = vmatpush1.msra.mxu0 %v282
    %825 = vmatprep.subr.mxu0 0.0
    %826 = vmatpush1.msra.mxu0 %v283
    %827 = vmatprep.subr.mxu0 0.0
    %828 = vmatpush1.msra.mxu0 %v284
    %829 = vmatprep.subr.mxu0 0.0
    %830 = vmatpush1.msra.mxu0 %v285
    %831 = vmatprep.subr.mxu0 0.0
    %832 = vmatpush1.msra.mxu0 0.0
    %833 = vmatprep.subr.mxu0 0.0
    %834 = vmatpush1.msra.mxu0 0.0
    %835 = vmatprep.subr.mxu0 0.0
    %836 = vmatpush1.msra.mxu0 0.0
    %837 = vmatprep.subr.mxu0 0.0
    %838 = vmatpush1.msra.mxu0 0.0
    %839 = vmatprep.subr.mxu0 0.0
    %840 = vmatpush1.msra.mxu0 0.0
    %841 = vmatprep.subr.mxu0 0.0
    %842 = vmatpush1.msra.mxu0 0.0
    %843 = vmatprep.subr.mxu0 0.0
    %844 = vmatpush1.msra.mxu0 0.0
    %845 = vmatprep.subr.mxu0 0.0
    %846 = vmatpush1.msra.mxu0 0.0
    %847 = vmatprep.subr.mxu0 0.0
    %848 = vmatpush1.msra.mxu0 0.0
    %849 = vmatprep.subr.mxu0 0.0
    %850 = vmatpush1.msra.mxu0 0.0
    %851 = vmatprep.subr.mxu0 0.0
    %852 = vmatpush1.msra.mxu0 0.0
    %853 = vmatprep.subr.mxu0 0.0
    %854 = vmatpush1.msra.mxu0 0.0
    %855 = vmatprep.subr.mxu0 0.0
    %856 = vmatpush1.msra.mxu0 0.0
    %857 = vmatprep.subr.mxu0 0.0
    %858 = vmatpush1.msra.mxu0 0.0
    %859 = vmatprep.subr.mxu0 0.0
    %860 = vmatpush1.msra.mxu0 0.0
    %861 = vmatprep.subr.mxu0 0.0
    %862 = vmatpush1.msra.mxu0 0.0
    %863 = vmatprep.subr.mxu0 0.0
    %864 = vmatpush1.msra.mxu0 0.0
    %865 = vmatprep.subr.mxu0 0.0
    %866 = vmatpush1.msra.mxu0 0.0
    %867 = vmatprep.subr.mxu0 0.0
    %868 = vmatpush1.msra.mxu0 0.0
    %869 = vmatprep.subr.mxu0 0.0
    %870 = vmatpush1.msra.mxu0 0.0
    %871 = vmatprep.subr.mxu0 0.0
    %872 = vmatpush1.msra.mxu0 0.0
    %873 = vmatprep.subr.mxu0 0.0
    %874 = vmatpush1.msra.mxu0 0.0
    %875 = vmatprep.subr.mxu0 0.0
    %876 = vmatpush1.msra.mxu0 0.0
    %877 = vmatprep.subr.mxu0 0.0
    %878 = vmatpush1.msra.mxu0 0.0
    %879 = vmatprep.subr.mxu0 0.0
    %880 = vmatpush1.msra.mxu0 0.0
    %881 = vmatprep.subr.mxu0 0.0
    %882 = vmatpush1.msra.mxu0 0.0
    %883 = vmatprep.subr.mxu0 0.0
    %884 = vmatpush1.msra.mxu0 0.0
    %885 = vmatprep.subr.mxu0 0.0
    %886 = vmatpush1.msra.mxu0 0.0
    %887 = vmatprep.mubr.f32.mxu0 0.0
    %888 = vmatmul.mubr.f32.gmra.mrb[0].mxu0 %v821
    %v889 = vpop.f32.mrb[0].mxu0
    %v890 = vadd.f32 %v291, %v889
    %v891 = vpop.f32.mrb[0].mxu0
    %892 = vdwg.mxu0
    %v893 = vadd.f32 %v820, %v890
    %v894 = vxor.u32 %v893, 2147483648
    %v895 = vmul.f32 %v894, 1.442695
    %v896 = vpow.pop %v895
    %v897 = vadd.f32 %v896, 1.0
    %v898 = vrcp.pop %v897
    %v899 = vmul.f32 1.0, %v898
    %901 = vrot.lane.b32.xlu0 %v890, 64
    %v902 = vpop.permute.xlu0 %901
    %v904 = vmul.f32 %v899, %v902
    %906 = vrot.lane.b32.xlu0 %v904, 64
    %v907 = vpop.permute.xlu0 %906
    %v909 = vadd.f32 %v820, %v907
    %v910 = vtanh.pop %v909
    %v911 = vsub.f32 1.0, %v899
    %913 = vrot.lane.b32.xlu0 %v910, 96
    %v914 = vpop.permute.xlu0 %913
    %v916 = vmul.f32 %v911, %v914
    %v917 = vmul.f32 %v899, %v813
    %v918 = vadd.f32 %v916, %v917
    %920 = vrot.lane.b32.xlu0 %v918, 96
    %v921 = vpop.permute.xlu0 %920
    %923 = vst.msk [vmem:[%s819] sm:$0xff] %vm294, %v921
    %s924 = scalar_lea.vmem [#allocation2], 48
    %v925 = vld [vmem:[%s924] sm:$0xff]
    %v926 = vsel %vm294, %v921, 0
    %928 = vmatprep.subr.mxu0 0.0
    %929 = vmatpush1.msra.mxu0 %v282
    %930 = vmatprep.subr.mxu0 0.0
    %931 = vmatpush1.msra.mxu0 %v283
    %932 = vmatprep.subr.mxu0 0.0
    %933 = vmatpush1.msra.mxu0 %v284
    %934 = vmatprep.subr.mxu0 0.0
    %935 = vmatpush1.msra.mxu0 %v285
    %936 = vmatprep.subr.mxu0 0.0
    %937 = vmatpush1.msra.mxu0 0.0
    %938 = vmatprep.subr.mxu0 0.0
    %939 = vmatpush1.msra.mxu0 0.0
    %940 = vmatprep.subr.mxu0 0.0
    %941 = vmatpush1.msra.mxu0 0.0
    %942 = vmatprep.subr.mxu0 0.0
    %943 = vmatpush1.msra.mxu0 0.0
    %944 = vmatprep.subr.mxu0 0.0
    %945 = vmatpush1.msra.mxu0 0.0
    %946 = vmatprep.subr.mxu0 0.0
    %947 = vmatpush1.msra.mxu0 0.0
    %948 = vmatprep.subr.mxu0 0.0
    %949 = vmatpush1.msra.mxu0 0.0
    %950 = vmatprep.subr.mxu0 0.0
    %951 = vmatpush1.msra.mxu0 0.0
    %952 = vmatprep.subr.mxu0 0.0
    %953 = vmatpush1.msra.mxu0 0.0
    %954 = vmatprep.subr.mxu0 0.0
    %955 = vmatpush1.msra.mxu0 0.0
    %956 = vmatprep.subr.mxu0 0.0
    %957 = vmatpush1.msra.mxu0 0.0
    %958 = vmatprep.subr.mxu0 0.0
    %959 = vmatpush1.msra.mxu0 0.0
    %960 = vmatprep.subr.mxu0 0.0
    %961 = vmatpush1.msra.mxu0 0.0
    %962 = vmatprep.subr.mxu0 0.0
    %963 = vmatpush1.msra.mxu0 0.0
    %964 = vmatprep.subr.mxu0 0.0
    %965 = vmatpush1.msra.mxu0 0.0
    %966 = vmatprep.subr.mxu0 0.0
    %967 = vmatpush1.msra.mxu0 0.0
    %968 = vmatprep.subr.mxu0 0.0
    %969 = vmatpush1.msra.mxu0 0.0
    %970 = vmatprep.subr.mxu0 0.0
    %971 = vmatpush1.msra.mxu0 0.0
    %972 = vmatprep.subr.mxu0 0.0
    %973 = vmatpush1.msra.mxu0 0.0
    %974 = vmatprep.subr.mxu0 0.0
    %975 = vmatpush1.msra.mxu0 0.0
    %976 = vmatprep.subr.mxu0 0.0
    %977 = vmatpush1.msra.mxu0 0.0
    %978 = vmatprep.subr.mxu0 0.0
    %979 = vmatpush1.msra.mxu0 0.0
    %980 = vmatprep.subr.mxu0 0.0
    %981 = vmatpush1.msra.mxu0 0.0
    %982 = vmatprep.subr.mxu0 0.0
    %983 = vmatpush1.msra.mxu0 0.0
    %984 = vmatprep.subr.mxu0 0.0
    %985 = vmatpush1.msra.mxu0 0.0
    %986 = vmatprep.subr.mxu0 0.0
    %987 = vmatpush1.msra.mxu0 0.0
    %988 = vmatprep.subr.mxu0 0.0
    %989 = vmatpush1.msra.mxu0 0.0
    %990 = vmatprep.subr.mxu0 0.0
    %991 = vmatpush1.msra.mxu0 0.0
    %992 = vmatprep.mubr.f32.mxu0 0.0
    %993 = vmatmul.mubr.f32.gmra.mrb[0].mxu0 %v926
    %v994 = vpop.f32.mrb[0].mxu0
    %v995 = vadd.f32 %v291, %v994
    %v996 = vpop.f32.mrb[0].mxu0
    %997 = vdwg.mxu0
    %v998 = vadd.f32 %v925, %v995
    %v999 = vxor.u32 %v998, 2147483648
    %v1000 = vmul.f32 %v999, 1.442695
    %v1001 = vpow.pop %v1000
    %v1002 = vadd.f32 %v1001, 1.0
    %v1003 = vrcp.pop %v1002
    %v1004 = vmul.f32 1.0, %v1003
    %1006 = vrot.lane.b32.xlu0 %v995, 64
    %v1007 = vpop.permute.xlu0 %1006
    %v1009 = vmul.f32 %v1004, %v1007
    %1011 = vrot.lane.b32.xlu0 %v1009, 64
    %v1012 = vpop.permute.xlu0 %1011
    %v1014 = vadd.f32 %v925, %v1012
    %v1015 = vtanh.pop %v1014
    %v1016 = vsub.f32 1.0, %v1004
    %1018 = vrot.lane.b32.xlu0 %v1015, 96
    %v1019 = vpop.permute.xlu0 %1018
    %v1021 = vmul.f32 %v1016, %v1019
    %v1022 = vmul.f32 %v1004, %v918
    %v1023 = vadd.f32 %v1021, %v1022
    %1025 = vrot.lane.b32.xlu0 %v1023, 96
    %v1026 = vpop.permute.xlu0 %1025
    %1028 = vst.msk [vmem:[%s924] sm:$0xff] %vm294, %v1026
    %s1029 = scalar_lea.vmem [#allocation2], 56
    %v1030 = vld [vmem:[%s1029] sm:$0xff]
    %v1031 = vsel %vm294, %v1026, 0
    %1033 = vmatprep.subr.mxu0 0.0
    %1034 = vmatpush1.msra.mxu0 %v282
    %1035 = vmatprep.subr.mxu0 0.0
    %1036 = vmatpush1.msra.mxu0 %v283
    %1037 = vmatprep.subr.mxu0 0.0
    %1038 = vmatpush1.msra.mxu0 %v284
    %1039 = vmatprep.subr.mxu0 0.0
    %1040 = vmatpush1.msra.mxu0 %v285
    %1041 = vmatprep.subr.mxu0 0.0
    %1042 = vmatpush1.msra.mxu0 0.0
    %1043 = vmatprep.subr.mxu0 0.0
    %1044 = vmatpush1.msra.mxu0 0.0
    %1045 = vmatprep.subr.mxu0 0.0
    %1046 = vmatpush1.msra.mxu0 0.0
    %1047 = vmatprep.subr.mxu0 0.0
    %1048 = vmatpush1.msra.mxu0 0.0
    %1049 = vmatprep.subr.mxu0 0.0
    %1050 = vmatpush1.msra.mxu0 0.0
    %1051 = vmatprep.subr.mxu0 0.0
    %1052 = vmatpush1.msra.mxu0 0.0
    %1053 = vmatprep.subr.mxu0 0.0
    %1054 = vmatpush1.msra.mxu0 0.0
    %1055 = vmatprep.subr.mxu0 0.0
    %1056 = vmatpush1.msra.mxu0 0.0
    %1057 = vmatprep.subr.mxu0 0.0
    %1058 = vmatpush1.msra.mxu0 0.0
    %1059 = vmatprep.subr.mxu0 0.0
    %1060 = vmatpush1.msra.mxu0 0.0
    %1061 = vmatprep.subr.mxu0 0.0
    %1062 = vmatpush1.msra.mxu0 0.0
    %1063 = vmatprep.subr.mxu0 0.0
    %1064 = vmatpush1.msra.mxu0 0.0
    %1065 = vmatprep.subr.mxu0 0.0
    %1066 = vmatpush1.msra.mxu0 0.0
    %1067 = vmatprep.subr.mxu0 0.0
    %1068 = vmatpush1.msra.mxu0 0.0
    %1069 = vmatprep.subr.mxu0 0.0
    %1070 = vmatpush1.msra.mxu0 0.0
    %1071 = vmatprep.subr.mxu0 0.0
    %1072 = vmatpush1.msra.mxu0 0.0
    %1073 = vmatprep.subr.mxu0 0.0
    %1074 = vmatpush1.msra.mxu0 0.0
    %1075 = vmatprep.subr.mxu0 0.0
    %1076 = vmatpush1.msra.mxu0 0.0
    %1077 = vmatprep.subr.mxu0 0.0
    %1078 = vmatpush1.msra.mxu0 0.0
    %1079 = vmatprep.subr.mxu0 0.0
    %1080 = vmatpush1.msra.mxu0 0.0
    %1081 = vmatprep.subr.mxu0 0.0
    %1082 = vmatpush1.msra.mxu0 0.0
    %1083 = vmatprep.subr.mxu0 0.0
    %1084 = vmatpush1.msra.mxu0 0.0
    %1085 = vmatprep.subr.mxu0 0.0
    %1086 = vmatpush1.msra.mxu0 0.0
    %1087 = vmatprep.subr.mxu0 0.0
    %1088 = vmatpush1.msra.mxu0 0.0
    %1089 = vmatprep.subr.mxu0 0.0
    %1090 = vmatpush1.msra.mxu0 0.0
    %1091 = vmatprep.subr.mxu0 0.0
    %1092 = vmatpush1.msra.mxu0 0.0
    %1093 = vmatprep.subr.mxu0 0.0
    %1094 = vmatpush1.msra.mxu0 0.0
    %1095 = vmatprep.subr.mxu0 0.0
    %1096 = vmatpush1.msra.mxu0 0.0
    %1097 = vmatprep.mubr.f32.mxu0 0.0
    %1098 = vmatmul.mubr.f32.gmra.mrb[0].mxu0 %v1031
    %v1099 = vpop.f32.mrb[0].mxu0
    %v1100 = vadd.f32 %v291, %v1099
    %v1101 = vpop.f32.mrb[0].mxu0
    %1102 = vdwg.mxu0
    %v1103 = vadd.f32 %v1030, %v1100
    %v1104 = vxor.u32 %v1103, 2147483648
    %v1105 = vmul.f32 %v1104, 1.442695
    %v1106 = vpow.pop %v1105
    %v1107 = vadd.f32 %v1106, 1.0
    %v1108 = vrcp.pop %v1107
    %v1109 = vmul.f32 1.0, %v1108
    %1111 = vrot.lane.b32.xlu0 %v1100, 64
    %v1112 = vpop.permute.xlu0 %1111
    %v1114 = vmul.f32 %v1109, %v1112
    %1116 = vrot.lane.b32.xlu0 %v1114, 64
    %v1117 = vpop.permute.xlu0 %1116
    %v1119 = vadd.f32 %v1030, %v1117
    %v1120 = vtanh.pop %v1119
    %v1121 = vsub.f32 1.0, %v1109
    %1123 = vrot.lane.b32.xlu0 %v1120, 96
    %v1124 = vpop.permute.xlu0 %1123
    %v1126 = vmul.f32 %v1121, %v1124
    %v1127 = vmul.f32 %v1109, %v1023
    %v1128 = vadd.f32 %v1126, %v1127
    %1130 = vrot.lane.b32.xlu0 %v1128, 96
    %v1131 = vpop.permute.xlu0 %1130
    %1133 = vst.msk [vmem:[%s1029] sm:$0xff] %vm294, %v1131
    %v1134 = vld [vmem:[#allocation2] sm:$0xff]
    %v1135 = vld [vmem:[#allocation2 + $0x8] sm:$0xff]
    %v1136 = vld [vmem:[#allocation2 + $0x10] sm:$0xff]
    %v1137 = vld [vmem:[#allocation2 + $0x18] sm:$0xff]
    %v1138 = vld [vmem:[#allocation2 + $0x20] sm:$0xff]
    %v1139 = vld [vmem:[#allocation2 + $0x28] sm:$0xff]
    %v1140 = vld [vmem:[#allocation2 + $0x30] sm:$0xff]
    %v1141 = vld [vmem:[#allocation2 + $0x38] sm:$0xff]
    %v1142 = vld [vmem:[%s5] sm:$0xff]
    %v1143 = vld [vmem:[%s5 + $0x8] sm:$0xff]
    %v1144 = vld [vmem:[%s5 + $0x10] sm:$0xff]
    %v1145 = vld [vmem:[%s5 + $0x18] sm:$0xff]
    %v1146 = vld [vmem:[#allocation8] sm:$0x1]
    %v1148 = vlaneseq
    %v1149 = vshrl.u32 %v1148, 7
    %v1150 = vsub.s32 0, %v1149
    %v1151 = vrot.slane %v1146, %v1150
    %v1153 = vsel %vm294, %v1131, 0
    %1155 = vmatprep.subr.mxu0 0.0
    %1156 = vmatpush1.msra.mxu0 %v1142
    %1157 = vmatprep.subr.mxu0 0.0
    %1158 = vmatpush1.msra.mxu0 %v1143
    %1159 = vmatprep.subr.mxu0 0.0
    %1160 = vmatpush1.msra.mxu0 %v1144
    %1161 = vmatprep.subr.mxu0 0.0
    %1162 = vmatpush1.msra.mxu0 %v1145
    %1163 = vmatprep.subr.mxu0 0.0
    %1164 = vmatpush1.msra.mxu0 0.0
    %1165 = vmatprep.subr.mxu0 0.0
    %1166 = vmatpush1.msra.mxu0 0.0
    %1167 = vmatprep.subr.mxu0 0.0
    %1168 = vmatpush1.msra.mxu0 0.0
    %1169 = vmatprep.subr.mxu0 0.0
    %1170 = vmatpush1.msra.mxu0 0.0
    %1171 = vmatprep.subr.mxu0 0.0
    %1172 = vmatpush1.msra.mxu0 0.0
    %1173 = vmatprep.subr.mxu0 0.0
    %1174 = vmatpush1.msra.mxu0 0.0
    %1175 = vmatprep.subr.mxu0 0.0
    %1176 = vmatpush1.msra.mxu0 0.0
    %1177 = vmatprep.subr.mxu0 0.0
    %1178 = vmatpush1.msra.mxu0 0.0
    %1179 = vmatprep.subr.mxu0 0.0
    %1180 = vmatpush1.msra.mxu0 0.0
    %1181 = vmatprep.subr.mxu0 0.0
    %1182 = vmatpush1.msra.mxu0 0.0
    %1183 = vmatprep.subr.mxu0 0.0
    %1184 = vmatpush1.msra.mxu0 0.0
    %1185 = vmatprep.subr.mxu0 0.0
    %1186 = vmatpush1.msra.mxu0 0.0
    %1187 = vmatprep.subr.mxu0 0.0
    %1188 = vmatpush1.msra.mxu0 0.0
    %1189 = vmatprep.subr.mxu0 0.0
    %1190 = vmatpush1.msra.mxu0 0.0
    %1191 = vmatprep.subr.mxu0 0.0
    %1192 = vmatpush1.msra.mxu0 0.0
    %1193 = vmatprep.subr.mxu0 0.0
    %1194 = vmatpush1.msra.mxu0 0.0
    %1195 = vmatprep.subr.mxu0 0.0
    %1196 = vmatpush1.msra.mxu0 0.0
    %1197 = vmatprep.subr.mxu0 0.0
    %1198 = vmatpush1.msra.mxu0 0.0
    %1199 = vmatprep.subr.mxu0 0.0
    %1200 = vmatpush1.msra.mxu0 0.0
    %1201 = vmatprep.subr.mxu0 0.0
    %1202 = vmatpush1.msra.mxu0 0.0
    %1203 = vmatprep.subr.mxu0 0.0
    %1204 = vmatpush1.msra.mxu0 0.0
    %1205 = vmatprep.subr.mxu0 0.0
    %1206 = vmatpush1.msra.mxu0 0.0
    %1207 = vmatprep.subr.mxu0 0.0
    %1208 = vmatpush1.msra.mxu0 0.0
    %1209 = vmatprep.subr.mxu0 0.0
    %1210 = vmatpush1.msra.mxu0 0.0
    %1211 = vmatprep.subr.mxu0 0.0
    %1212 = vmatpush1.msra.mxu0 0.0
    %1213 = vmatprep.subr.mxu0 0.0
    %1214 = vmatpush1.msra.mxu0 0.0
    %1215 = vmatprep.subr.mxu0 0.0
    %1216 = vmatpush1.msra.mxu0 0.0
    %1217 = vmatprep.subr.mxu0 0.0
    %1218 = vmatpush1.msra.mxu0 0.0
    %1219 = vmatprep.mubr.f32.mxu0 0.0
    %1220 = vmatmul.mubr.f32.gmra.mrb[0].mxu0 %v1153
    %v1221 = vpop.f32.mrb[0].mxu0
    %v1222 = vadd.f32 %v1151, %v1221
    %v1223 = vpop.f32.mrb[0].mxu0
    %1224 = vdwg.mxu0
    %v1225 = vmul.f32 %v1222, 0.35355338
    %v1226 = vld [vmem:[%s7] sm:$0xff]
    %v1227 = vld [vmem:[%s7 + $0x8] sm:$0xff]
    %v1228 = vld [vmem:[%s7 + $0x10] sm:$0xff]
    %v1229 = vld [vmem:[%s7 + $0x18] sm:$0xff]
    %v1230 = vld [vmem:[#allocation9] sm:$0x1]
    %v1232 = vlaneseq
    %v1233 = vshrl.u32 %v1232, 7
    %v1234 = vsub.s32 0, %v1233
    %v1235 = vrot.slane %v1230, %v1234
    %v1238 = vsel %vm294, %v1134, 0
    %v1241 = vsel %vm294, %v1135, 0
    %v1244 = vsel %vm294, %v1136, 0
    %v1247 = vsel %vm294, %v1137, 0
    %v1250 = vsel %vm294, %v1138, 0
    %v1253 = vsel %vm294, %v1139, 0
    %v1256 = vsel %vm294, %v1140, 0
    %v1259 = vsel %vm294, %v1141, 0
    %1261 = vmatprep.subr.mxu0 0.0
    %1262 = vmatpush1.msra.mxu0 %v1226
    %1263 = vmatprep.subr.mxu0 0.0
    %1264 = vmatpush1.msra.mxu0 %v1227
    %1265 = vmatprep.subr.mxu0 0.0
    %1266 = vmatpush1.msra.mxu0 %v1228
    %1267 = vmatprep.subr.mxu0 0.0
    %1268 = vmatpush1.msra.mxu0 %v1229
    %1269 = vmatprep.subr.mxu0 0.0
    %1270 = vmatpush1.msra.mxu0 0.0
    %1271 = vmatprep.subr.mxu0 0.0
    %1272 = vmatpush1.msra.mxu0 0.0
    %1273 = vmatprep.subr.mxu0 0.0
    %1274 = vmatpush1.msra.mxu0 0.0
    %1275 = vmatprep.subr.mxu0 0.0
    %1276 = vmatpush1.msra.mxu0 0.0
    %1277 = vmatprep.subr.mxu0 0.0
    %1278 = vmatpush1.msra.mxu0 0.0
    %1279 = vmatprep.subr.mxu0 0.0
    %1280 = vmatpush1.msra.mxu0 0.0
    %1281 = vmatprep.subr.mxu0 0.0
    %1282 = vmatpush1.msra.mxu0 0.0
    %1283 = vmatprep.subr.mxu0 0.0
    %1284 = vmatpush1.msra.mxu0 0.0
    %1285 = vmatprep.subr.mxu0 0.0
    %1286 = vmatpush1.msra.mxu0 0.0
    %1287 = vmatprep.subr.mxu0 0.0
    %1288 = vmatpush1.msra.mxu0 0.0
    %1289 = vmatprep.subr.mxu0 0.0
    %1290 = vmatpush1.msra.mxu0 0.0
    %1291 = vmatprep.subr.mxu0 0.0
    %1292 = vmatpush1.msra.mxu0 0.0
    %1293 = vmatprep.subr.mxu0 0.0
    %1294 = vmatpush1.msra.mxu0 0.0
    %1295 = vmatprep.subr.mxu0 0.0
    %1296 = vmatpush1.msra.mxu0 0.0
    %1297 = vmatprep.subr.mxu0 0.0
    %1298 = vmatpush1.msra.mxu0 0.0
    %1299 = vmatprep.subr.mxu0 0.0
    %1300 = vmatpush1.msra.mxu0 0.0
    %1301 = vmatprep.subr.mxu0 0.0
    %1302 = vmatpush1.msra.mxu0 0.0
    %1303 = vmatprep.subr.mxu0 0.0
    %1304 = vmatpush1.msra.mxu0 0.0
    %1305 = vmatprep.subr.mxu0 0.0
    %1306 = vmatpush1.msra.mxu0 0.0
    %1307 = vmatprep.subr.mxu0 0.0
    %1308 = vmatpush1.msra.mxu0 0.0
    %1309 = vmatprep.subr.mxu0 0.0
    %1310 = vmatpush1.msra.mxu0 0.0
    %1311 = vmatprep.subr.mxu0 0.0
    %1312 = vmatpush1.msra.mxu0 0.0
    %1313 = vmatprep.subr.mxu0 0.0
    %1314 = vmatpush1.msra.mxu0 0.0
    %1315 = vmatprep.subr.mxu0 0.0
    %1316 = vmatpush1.msra.mxu0 0.0
    %1317 = vmatprep.subr.mxu0 0.0
    %1318 = vmatpush1.msra.mxu0 0.0
    %1319 = vmatprep.subr.mxu0 0.0
    %1320 = vmatpush1.msra.mxu0 0.0
    %1321 = vmatprep.subr.mxu0 0.0
    %1322 = vmatpush1.msra.mxu0 0.0
    %1323 = vmatprep.subr.mxu0 0.0
    %1324 = vmatpush1.msra.mxu0 0.0
    %1325 = vmatprep.mubr.f32.mxu0 0.0
    %1326 = vmatmul.mubr.f32.gmra.mrb[0].mxu0 %v1238
    %v1327 = vpop.f32.mrb[0].mxu0
    %v1328 = vadd.f32 %v1235, %v1327
    %v1329 = vpop.f32.mrb[0].mxu0
    %1330 = vmatprep.mubr.f32.mxu0 0.0
    %1331 = vmatmul.mubr.f32.gmra.mrb[0].mxu0 %v1241
    %v1332 = vpop.f32.mrb[0].mxu0
    %v1333 = vadd.f32 %v1235, %v1332
    %v1334 = vpop.f32.mrb[0].mxu0
    %1335 = vmatprep.mubr.f32.mxu0 0.0
    %1336 = vmatmul.mubr.f32.gmra.mrb[0].mxu0 %v1244
    %v1337 = vpop.f32.mrb[0].mxu0
    %v1338 = vadd.f32 %v1235, %v1337
    %v1339 = vpop.f32.mrb[0].mxu0
    %1340 = vmatprep.mubr.f32.mxu0 0.0
    %1341 = vmatmul.mubr.f32.gmra.mrb[0].mxu0 %v1247
    %v1342 = vpop.f32.mrb[0].mxu0
    %v1343 = vadd.f32 %v1235, %v1342
    %v1344 = vpop.f32.mrb[0].mxu0
    %1345 = vmatprep.mubr.f32.mxu0 0.0
    %1346 = vmatmul.mubr.f32.gmra.mrb[0].mxu0 %v1250
    %v1347 = vpop.f32.mrb[0].mxu0
    %v1348 = vadd.f32 %v1235, %v1347
    %v1349 = vpop.f32.mrb[0].mxu0
    %1350 = vmatprep.mubr.f32.mxu0 0.0
    %1351 = vmatmul.mubr.f32.gmra.mrb[0].mxu0 %v1253
    %v1352 = vpop.f32.mrb[0].mxu0
    %v1353 = vadd.f32 %v1235, %v1352
    %v1354 = vpop.f32.mrb[0].mxu0
    %1355 = vmatprep.mubr.f32.mxu0 0.0
    %1356 = vmatmul.mubr.f32.gmra.mrb[0].mxu0 %v1256
    %v1357 = vpop.f32.mrb[0].mxu0
    %v1358 = vadd.f32 %v1235, %v1357
    %v1359 = vpop.f32.mrb[0].mxu0
    %1360 = vmatprep.mubr.f32.mxu0 0.0
    %1361 = vmatmul.mubr.f32.gmra.mrb[0].mxu0 %v1259
    %v1362 = vpop.f32.mrb[0].mxu0
    %v1363 = vadd.f32 %v1235, %v1362
    %v1364 = vpop.f32.mrb[0].mxu0
    %1365 = vdwg.mxu0
    %v1366 = vmul.f32 %v1225, %v1328
    %v1367 = vmul.f32 %v1225, %v1333
    %v1368 = vmul.f32 %v1225, %v1338
    %v1369 = vmul.f32 %v1225, %v1343
    %v1370 = vmul.f32 %v1225, %v1348
    %v1371 = vmul.f32 %v1225, %v1353
    %v1372 = vmul.f32 %v1225, %v1358
    %v1373 = vmul.f32 %v1225, %v1363
    %v1374 = vld [vmem:[%s13] sm:$0xff]
    %v1375 = vld [vmem:[%s13 + $0x8] sm:$0xff]
    %v1376 = vld [vmem:[%s13 + $0x10] sm:$0xff]
    %v1377 = vld [vmem:[%s13 + $0x18] sm:$0xff]
    %v1379 = vsel %vm294, %v1366, 0
    %v1382 = vsel %vm294, %v1367, 0
    %v1385 = vsel %vm294, %v1368, 0
    %v1388 = vsel %vm294, %v1369, 0
    %v1391 = vsel %vm294, %v1370, 0
    %v1394 = vsel %vm294, %v1371, 0
    %v1397 = vsel %vm294, %v1372, 0
    %v1400 = vsel %vm294, %v1373, 0
    %1402 = vmatprep.subr.mxu0 0.0
    %1403 = vmatpush1.msra.mxu0 %v1374
    %1404 = vmatprep.subr.mxu0 0.0
    %1405 = vmatpush1.msra.mxu0 %v1375
    %1406 = vmatprep.subr.mxu0 0.0
    %1407 = vmatpush1.msra.mxu0 %v1376
    %1408 = vmatprep.subr.mxu0 0.0
    %1409 = vmatpush1.msra.mxu0 %v1377
    %1410 = vmatprep.subr.mxu0 0.0
    %1411 = vmatpush1.msra.mxu0 0.0
    %1412 = vmatprep.subr.mxu0 0.0
    %1413 = vmatpush1.msra.mxu0 0.0
    %1414 = vmatprep.subr.mxu0 0.0
    %1415 = vmatpush1.msra.mxu0 0.0
    %1416 = vmatprep.subr.mxu0 0.0
    %1417 = vmatpush1.msra.mxu0 0.0
    %1418 = vmatprep.subr.mxu0 0.0
    %1419 = vmatpush1.msra.mxu0 0.0
    %1420 = vmatprep.subr.mxu0 0.0
    %1421 = vmatpush1.msra.mxu0 0.0
    %1422 = vmatprep.subr.mxu0 0.0
    %1423 = vmatpush1.msra.mxu0 0.0
    %1424 = vmatprep.subr.mxu0 0.0
    %1425 = vmatpush1.msra.mxu0 0.0
    %1426 = vmatprep.subr.mxu0 0.0
    %1427 = vmatpush1.msra.mxu0 0.0
    %1428 = vmatprep.subr.mxu0 0.0
    %1429 = vmatpush1.msra.mxu0 0.0
    %1430 = vmatprep.subr.mxu0 0.0
    %1431 = vmatpush1.msra.mxu0 0.0
    %1432 = vmatprep.subr.mxu0 0.0
    %1433 = vmatpush1.msra.mxu0 0.0
    %1434 = vmatprep.subr.mxu0 0.0
    %1435 = vmatpush1.msra.mxu0 0.0
    %1436 = vmatprep.subr.mxu0 0.0
    %1437 = vmatpush1.msra.mxu0 0.0
    %1438 = vmatprep.subr.mxu0 0.0
    %1439 = vmatpush1.msra.mxu0 0.0
    %1440 = vmatprep.subr.mxu0 0.0
    %1441 = vmatpush1.msra.mxu0 0.0
    %1442 = vmatprep.subr.mxu0 0.0
    %1443 = vmatpush1.msra.mxu0 0.0
    %1444 = vmatprep.subr.mxu0 0.0
    %1445 = vmatpush1.msra.mxu0 0.0
    %1446 = vmatprep.subr.mxu0 0.0
    %1447 = vmatpush1.msra.mxu0 0.0
    %1448 = vmatprep.subr.mxu0 0.0
    %1449 = vmatpush1.msra.mxu0 0.0
    %1450 = vmatprep.subr.mxu0 0.0
    %1451 = vmatpush1.msra.mxu0 0.0
    %1452 = vmatprep.subr.mxu0 0.0
    %1453 = vmatpush1.msra.mxu0 0.0
    %1454 = vmatprep.subr.mxu0 0.0
    %1455 = vmatpush1.msra.mxu0 0.0
    %1456 = vmatprep.subr.mxu0 0.0
    %1457 = vmatpush1.msra.mxu0 0.0
    %1458 = vmatprep.subr.mxu0 0.0
    %1459 = vmatpush1.msra.mxu0 0.0
    %1460 = vmatprep.subr.mxu0 0.0
    %1461 = vmatpush1.msra.mxu0 0.0
    %1462 = vmatprep.subr.mxu0 0.0
    %1463 = vmatpush1.msra.mxu0 0.0
    %1464 = vmatprep.subr.mxu0 0.0
    %1465 = vmatpush1.msra.mxu0 0.0
    %1466 = vmatprep.mubr.f32.mxu0 0.0
    %1467 = vmatmul.mubr.f32.gmra.mrb[0].mxu0 %v1379
    %v1468 = vpop.f32.mrb[0].mxu0
    %v1469 = vadd.f32 0.0, %v1468
    %v1470 = vpop.f32.mrb[0].mxu0
    %1471 = vmatprep.mubr.f32.mxu0 0.0
    %1472 = vmatmul.mubr.f32.gmra.mrb[0].mxu0 %v1382
    %v1473 = vpop.f32.mrb[0].mxu0
    %v1474 = vadd.f32 0.0, %v1473
    %v1475 = vpop.f32.mrb[0].mxu0
    %1476 = vmatprep.mubr.f32.mxu0 0.0
    %1477 = vmatmul.mubr.f32.gmra.mrb[0].mxu0 %v1385
    %v1478 = vpop.f32.mrb[0].mxu0
    %v1479 = vadd.f32 0.0, %v1478
    %v1480 = vpop.f32.mrb[0].mxu0
    %1481 = vmatprep.mubr.f32.mxu0 0.0
    %1482 = vmatmul.mubr.f32.gmra.mrb[0].mxu0 %v1388
    %v1483 = vpop.f32.mrb[0].mxu0
    %v1484 = vadd.f32 0.0, %v1483
    %v1485 = vpop.f32.mrb[0].mxu0
    %1486 = vmatprep.mubr.f32.mxu0 0.0
    %1487 = vmatmul.mubr.f32.gmra.mrb[0].mxu0 %v1391
    %v1488 = vpop.f32.mrb[0].mxu0
    %v1489 = vadd.f32 0.0, %v1488
    %v1490 = vpop.f32.mrb[0].mxu0
    %1491 = vmatprep.mubr.f32.mxu0 0.0
    %1492 = vmatmul.mubr.f32.gmra.mrb[0].mxu0 %v1394
    %v1493 = vpop.f32.mrb[0].mxu0
    %v1494 = vadd.f32 0.0, %v1493
    %v1495 = vpop.f32.mrb[0].mxu0
    %1496 = vmatprep.mubr.f32.mxu0 0.0
    %1497 = vmatmul.mubr.f32.gmra.mrb[0].mxu0 %v1397
    %v1498 = vpop.f32.mrb[0].mxu0
    %v1499 = vadd.f32 0.0, %v1498
    %v1500 = vpop.f32.mrb[0].mxu0
    %1501 = vmatprep.mubr.f32.mxu0 0.0
    %1502 = vmatmul.mubr.f32.gmra.mrb[0].mxu0 %v1400
    %v1503 = vpop.f32.mrb[0].mxu0
    %v1504 = vadd.f32 0.0, %v1503
    %v1505 = vpop.f32.mrb[0].mxu0
    %1506 = vdwg.mxu0
    %v1507 = vsel %vm139, %v1469, -inf
    %v1508 = vsel %vm139, %v1474, -inf
    %v1509 = vsel %vm139, %v1479, -inf
    %v1510 = vsel %vm139, %v1484, -inf
    %v1511 = vsel %vm139, %v1489, -inf
    %v1512 = vmax.f32 %v1507, %v1511
    %v1513 = vsel %vm139, %v1494, -inf
    %v1514 = vmax.f32 %v1508, %v1513
    %v1515 = vsel %vm139, %v1499, -inf
    %v1516 = vmax.f32 %v1509, %v1515
    %v1517 = vsel %vm139, %v1504, -inf
    %v1518 = vmax.f32 %v1510, %v1517
    %v1519 = vmax.f32 %v1512, %v1514
    %v1520 = vmax.f32 %v1516, %v1518
    %v1521 = vmax.f32 %v1519, %v1520
    %v1522 = vsub.f32 %v1469, %v1521
    %v1523 = vsub.f32 %v1474, %v1521
    %v1524 = vsub.f32 %v1479, %v1521
    %v1525 = vsub.f32 %v1484, %v1521
    %v1526 = vsub.f32 %v1489, %v1521
    %v1527 = vsub.f32 %v1494, %v1521
    %v1528 = vsub.f32 %v1499, %v1521
    %v1529 = vsub.f32 %v1504, %v1521
    %v1530 = vmul.f32 %v1522, 1.442695
    %v1531 = vpow.pop %v1530
    %v1532 = vmul.f32 %v1523, 1.442695
    %v1533 = vpow.pop %v1532
    %v1534 = vmul.f32 %v1524, 1.442695
    %v1535 = vpow.pop %v1534
    %v1536 = vmul.f32 %v1525, 1.442695
    %v1537 = vpow.pop %v1536
    %v1538 = vmul.f32 %v1526, 1.442695
    %v1539 = vpow.pop %v1538
    %v1540 = vmul.f32 %v1527, 1.442695
    %v1541 = vpow.pop %v1540
    %v1542 = vmul.f32 %v1528, 1.442695
    %v1543 = vpow.pop %v1542
    %v1544 = vmul.f32 %v1529, 1.442695
    %v1545 = vpow.pop %v1544
    %v1546 = vsel %vm139, %v1531, 0.0
    %v1547 = vsel %vm139, %v1533, 0.0
    %v1548 = vadd.f32 %v1546, %v1547
    %v1549 = vsel %vm139, %v1535, 0.0
    %v1550 = vadd.f32 %v1548, %v1549
    %v1551 = vsel %vm139, %v1537, 0.0
    %v1552 = vadd.f32 %v1550, %v1551
    %v1553 = vsel %vm139, %v1539, 0.0
    %v1554 = vadd.f32 %v1552, %v1553
    %v1555 = vsel %vm139, %v1541, 0.0
    %v1556 = vadd.f32 %v1554, %v1555
    %v1557 = vsel %vm139, %v1543, 0.0
    %v1558 = vadd.f32 %v1556, %v1557
    %v1559 = vsel %vm139, %v1545, 0.0
    %v1560 = vadd.f32 %v1558, %v1559
    %v1561 = vrcp.pop %v1560
    %v1562 = vmul.f32 %v1531, %v1561
    %v1563 = vmul.f32 %v1533, %v1561
    %v1564 = vmul.f32 %v1535, %v1561
    %v1565 = vmul.f32 %v1537, %v1561
    %v1566 = vmul.f32 %v1539, %v1561
    %v1567 = vmul.f32 %v1541, %v1561
    %v1568 = vmul.f32 %v1543, %v1561
    %v1569 = vmul.f32 %v1545, %v1561
    %v1570 = vld [vmem:[%s14] sm:$0xf]
    %v1572 = vsel %vm139, %v1562, 0
    %v1575 = vsel %vm139, %v1563, 0
    %v1578 = vsel %vm139, %v1564, 0
    %v1581 = vsel %vm139, %v1565, 0
    %v1584 = vsel %vm139, %v1566, 0
    %v1587 = vsel %vm139, %v1567, 0
    %v1590 = vsel %vm139, %v1568, 0
    %v1593 = vsel %vm139, %v1569, 0
    %v1596 = vsel %vm164, %v1570, 0
    %1598 = vmatprep.subr.mxu0 0.0
    %1599 = vmatpush1.msra.mxu0 %v1596
    %1600 = vmatprep.subr.mxu0 0.0
    %1601 = vmatpush1.msra.mxu0 0.0
    %1602 = vmatprep.subr.mxu0 0.0
    %1603 = vmatpush1.msra.mxu0 0.0
    %1604 = vmatprep.subr.mxu0 0.0
    %1605 = vmatpush1.msra.mxu0 0.0
    %1606 = vmatprep.subr.mxu0 0.0
    %1607 = vmatpush1.msra.mxu0 0.0
    %1608 = vmatprep.subr.mxu0 0.0
    %1609 = vmatpush1.msra.mxu0 0.0
    %1610 = vmatprep.subr.mxu0 0.0
    %1611 = vmatpush1.msra.mxu0 0.0
    %1612 = vmatprep.subr.mxu0 0.0
    %1613 = vmatpush1.msra.mxu0 0.0
    %1614 = vmatprep.subr.mxu0 0.0
    %1615 = vmatpush1.msra.mxu0 0.0
    %1616 = vmatprep.subr.mxu0 0.0
    %1617 = vmatpush1.msra.mxu0 0.0
    %1618 = vmatprep.subr.mxu0 0.0
    %1619 = vmatpush1.msra.mxu0 0.0
    %1620 = vmatprep.subr.mxu0 0.0
    %1621 = vmatpush1.msra.mxu0 0.0
    %1622 = vmatprep.subr.mxu0 0.0
    %1623 = vmatpush1.msra.mxu0 0.0
    %1624 = vmatprep.subr.mxu0 0.0
    %1625 = vmatpush1.msra.mxu0 0.0
    %1626 = vmatprep.subr.mxu0 0.0
    %1627 = vmatpush1.msra.mxu0 0.0
    %1628 = vmatprep.subr.mxu0 0.0
    %1629 = vmatpush1.msra.mxu0 0.0
    %1630 = vmatprep.subr.mxu0 0.0
    %1631 = vmatpush1.msra.mxu0 0.0
    %1632 = vmatprep.subr.mxu0 0.0
    %1633 = vmatpush1.msra.mxu0 0.0
    %1634 = vmatprep.subr.mxu0 0.0
    %1635 = vmatpush1.msra.mxu0 0.0
    %1636 = vmatprep.subr.mxu0 0.0
    %1637 = vmatpush1.msra.mxu0 0.0
    %1638 = vmatprep.subr.mxu0 0.0
    %1639 = vmatpush1.msra.mxu0 0.0
    %1640 = vmatprep.subr.mxu0 0.0
    %1641 = vmatpush1.msra.mxu0 0.0
    %1642 = vmatprep.subr.mxu0 0.0
    %1643 = vmatpush1.msra.mxu0 0.0
    %1644 = vmatprep.subr.mxu0 0.0
    %1645 = vmatpush1.msra.mxu0 0.0
    %1646 = vmatprep.subr.mxu0 0.0
    %1647 = vmatpush1.msra.mxu0 0.0
    %1648 = vmatprep.subr.mxu0 0.0
    %1649 = vmatpush1.msra.mxu0 0.0
    %1650 = vmatprep.subr.mxu0 0.0
    %1651 = vmatpush1.msra.mxu0 0.0
    %1652 = vmatprep.subr.mxu0 0.0
    %1653 = vmatpush1.msra.mxu0 0.0
    %1654 = vmatprep.subr.mxu0 0.0
    %1655 = vmatpush1.msra.mxu0 0.0
    %1656 = vmatprep.subr.mxu0 0.0
    %1657 = vmatpush1.msra.mxu0 0.0
    %1658 = vmatprep.subr.mxu0 0.0
    %1659 = vmatpush1.msra.mxu0 0.0
    %1660 = vmatprep.subr.mxu0 0.0
    %1661 = vmatpush1.msra.mxu0 0.0
    %1662 = vmatprep.mubr.f32.mxu0 0.0
    %1663 = vmatmul.mubr.f32.gmra.mrb[0].mxu0 %v1572
    %v1664 = vpop.f32.mrb[0].mxu0
    %v1665 = vadd.f32 0.0, %v1664
    %v1666 = vpop.f32.mrb[0].mxu0
    %1667 = vmatprep.mubr.f32.mxu0 0.0
    %1668 = vmatmul.mubr.f32.gmra.mrb[0].mxu0 %v1575
    %v1669 = vpop.f32.mrb[0].mxu0
    %v1670 = vadd.f32 0.0, %v1669
    %v1671 = vpop.f32.mrb[0].mxu0
    %1672 = vmatprep.mubr.f32.mxu0 0.0
    %1673 = vmatmul.mubr.f32.gmra.mrb[0].mxu0 %v1578
    %v1674 = vpop.f32.mrb[0].mxu0
    %v1675 = vadd.f32 0.0, %v1674
    %v1676 = vpop.f32.mrb[0].mxu0
    %1677 = vmatprep.mubr.f32.mxu0 0.0
    %1678 = vmatmul.mubr.f32.gmra.mrb[0].mxu0 %v1581
    %v1679 = vpop.f32.mrb[0].mxu0
    %v1680 = vadd.f32 0.0, %v1679
    %v1681 = vpop.f32.mrb[0].mxu0
    %1682 = vmatprep.mubr.f32.mxu0 0.0
    %1683 = vmatmul.mubr.f32.gmra.mrb[0].mxu0 %v1584
    %v1684 = vpop.f32.mrb[0].mxu0
    %v1685 = vadd.f32 0.0, %v1684
    %v1686 = vpop.f32.mrb[0].mxu0
    %1687 = vmatprep.mubr.f32.mxu0 0.0
    %1688 = vmatmul.mubr.f32.gmra.mrb[0].mxu0 %v1587
    %v1689 = vpop.f32.mrb[0].mxu0
    %v1690 = vadd.f32 0.0, %v1689
    %v1691 = vpop.f32.mrb[0].mxu0
    %1692 = vmatprep.mubr.f32.mxu0 0.0
    %1693 = vmatmul.mubr.f32.gmra.mrb[0].mxu0 %v1590
    %v1694 = vpop.f32.mrb[0].mxu0
    %v1695 = vadd.f32 0.0, %v1694
    %v1696 = vpop.f32.mrb[0].mxu0
    %1697 = vmatprep.mubr.f32.mxu0 0.0
    %1698 = vmatmul.mubr.f32.gmra.mrb[0].mxu0 %v1593
    %v1699 = vpop.f32.mrb[0].mxu0
    %v1700 = vadd.f32 0.0, %v1699
    %v1701 = vpop.f32.mrb[0].mxu0
    %1702 = vdwg.mxu0
    %1711 = vrot.lane.b32.xlu0 %v1328, 96
    %v1712 = vpop.permute.xlu0 %1711
    %1713 = vrot.lane.b32.xlu0 %v1333, 96
    %v1714 = vpop.permute.xlu0 %1713
    %1715 = vrot.lane.b32.xlu0 %v1338, 96
    %v1716 = vpop.permute.xlu0 %1715
    %1717 = vrot.lane.b32.xlu0 %v1343, 96
    %v1718 = vpop.permute.xlu0 %1717
    %1719 = vrot.lane.b32.xlu0 %v1348, 96
    %v1720 = vpop.permute.xlu0 %1719
    %1721 = vrot.lane.b32.xlu0 %v1353, 96
    %v1722 = vpop.permute.xlu0 %1721
    %1723 = vrot.lane.b32.xlu0 %v1358, 96
    %v1724 = vpop.permute.xlu0 %1723
    %1725 = vrot.lane.b32.xlu0 %v1363, 96
    %v1726 = vpop.permute.xlu0 %1725
    %v1735 = vmul.f32 %v1665, %v1712
    %v1736 = vmul.f32 %v1670, %v1714
    %v1737 = vmul.f32 %v1675, %v1716
    %v1738 = vmul.f32 %v1680, %v1718
    %v1739 = vmul.f32 %v1685, %v1720
    %v1740 = vmul.f32 %v1690, %v1722
    %v1741 = vmul.f32 %v1695, %v1724
    %v1742 = vmul.f32 %v1700, %v1726
    %v1743 = vsel %vm294, %v1735, 0.0
    %v1744 = vsel %vm294, %v1736, 0.0
    %v1745 = vadd.f32 %v1743, %v1744
    %v1746 = vsel %vm294, %v1737, 0.0
    %v1747 = vadd.f32 %v1745, %v1746
    %v1748 = vsel %vm294, %v1738, 0.0
    %v1749 = vadd.f32 %v1747, %v1748
    %v1750 = vsel %vm294, %v1739, 0.0
    %v1751 = vadd.f32 %v1749, %v1750
    %v1752 = vsel %vm294, %v1740, 0.0
    %v1753 = vadd.f32 %v1751, %v1752
    %v1754 = vsel %vm294, %v1741, 0.0
    %v1755 = vadd.f32 %v1753, %v1754
    %v1756 = vsel %vm294, %v1742, 0.0
    %v1757 = vadd.f32 %v1755, %v1756
    %v1758 = vld [vmem:[%s9] sm:$0xff]
    %v1759 = vld [vmem:[%s9 + $0x8] sm:$0xff]
    %v1760 = vld [vmem:[%s9 + $0x10] sm:$0xff]
    %v1761 = vld [vmem:[%s9 + $0x18] sm:$0xff]
    %v1762 = vld [vmem:[#allocation11] sm:$0x1]
    %v1764 = vlaneseq
    %v1765 = vshrl.u32 %v1764, 7
    %v1766 = vsub.s32 0, %v1765
    %v1767 = vrot.slane %v1762, %v1766
    %v1770 = vsel %vm294, %v1757, 0
    %1772 = vmatprep.subr.mxu0 0.0
    %1773 = vmatpush1.msra.mxu0 %v1758
    %1774 = vmatprep.subr.mxu0 0.0
    %1775 = vmatpush1.msra.mxu0 %v1759
    %1776 = vmatprep.subr.mxu0 0.0
    %1777 = vmatpush1.msra.mxu0 %v1760
    %1778 = vmatprep.subr.mxu0 0.0
    %1779 = vmatpush1.msra.mxu0 %v1761
    %1780 = vmatprep.subr.mxu0 0.0
    %1781 = vmatpush1.msra.mxu0 0.0
    %1782 = vmatprep.subr.mxu0 0.0
    %1783 = vmatpush1.msra.mxu0 0.0
    %1784 = vmatprep.subr.mxu0 0.0
    %1785 = vmatpush1.msra.mxu0 0.0
    %1786 = vmatprep.subr.mxu0 0.0
    %1787 = vmatpush1.msra.mxu0 0.0
    %1788 = vmatprep.subr.mxu0 0.0
    %1789 = vmatpush1.msra.mxu0 0.0
    %1790 = vmatprep.subr.mxu0 0.0
    %1791 = vmatpush1.msra.mxu0 0.0
    %1792 = vmatprep.subr.mxu0 0.0
    %1793 = vmatpush1.msra.mxu0 0.0
    %1794 = vmatprep.subr.mxu0 0.0
    %1795 = vmatpush1.msra.mxu0 0.0
    %1796 = vmatprep.subr.mxu0 0.0
    %1797 = vmatpush1.msra.mxu0 0.0
    %1798 = vmatprep.subr.mxu0 0.0
    %1799 = vmatpush1.msra.mxu0 0.0
    %1800 = vmatprep.subr.mxu0 0.0
    %1801 = vmatpush1.msra.mxu0 0.0
    %1802 = vmatprep.subr.mxu0 0.0
    %1803 = vmatpush1.msra.mxu0 0.0
    %1804 = vmatprep.subr.mxu0 0.0
    %1805 = vmatpush1.msra.mxu0 0.0
    %1806 = vmatprep.subr.mxu0 0.0
    %1807 = vmatpush1.msra.mxu0 0.0
    %1808 = vmatprep.subr.mxu0 0.0
    %1809 = vmatpush1.msra.mxu0 0.0
    %1810 = vmatprep.subr.mxu0 0.0
    %1811 = vmatpush1.msra.mxu0 0.0
    %1812 = vmatprep.subr.mxu0 0.0
    %1813 = vmatpush1.msra.mxu0 0.0
    %1814 = vmatprep.subr.mxu0 0.0
    %1815 = vmatpush1.msra.mxu0 0.0
    %1816 = vmatprep.subr.mxu0 0.0
    %1817 = vmatpush1.msra.mxu0 0.0
    %1818 = vmatprep.subr.mxu0 0.0
    %1819 = vmatpush1.msra.mxu0 0.0
    %1820 = vmatprep.subr.mxu0 0.0
    %1821 = vmatpush1.msra.mxu0 0.0
    %1822 = vmatprep.subr.mxu0 0.0
    %1823 = vmatpush1.msra.mxu0 0.0
    %1824 = vmatprep.subr.mxu0 0.0
    %1825 = vmatpush1.msra.mxu0 0.0
    %1826 = vmatprep.subr.mxu0 0.0
    %1827 = vmatpush1.msra.mxu0 0.0
    %1828 = vmatprep.subr.mxu0 0.0
    %1829 = vmatpush1.msra.mxu0 0.0
    %1830 = vmatprep.subr.mxu0 0.0
    %1831 = vmatpush1.msra.mxu0 0.0
    %1832 = vmatprep.subr.mxu0 0.0
    %1833 = vmatpush1.msra.mxu0 0.0
    %1834 = vmatprep.subr.mxu0 0.0
    %1835 = vmatpush1.msra.mxu0 0.0
    %1836 = vmatprep.mubr.f32.mxu0 0.0
    %1837 = vmatmul.mubr.f32.gmra.mrb[0].mxu0 %v1770
    %v1838 = vpop.f32.mrb[0].mxu0
    %v1839 = vadd.f32 %v1767, %v1838
    %v1840 = vpop.f32.mrb[0].mxu0
    %1841 = vdwg.mxu0
    %v1842 = vld [vmem:[#allocation12] sm:$0xff]
    %v1843 = vld [vmem:[#allocation12 + $0x8] sm:$0xff]
    %v1844 = vld [vmem:[#allocation12 + $0x10] sm:$0xff]
    %v1845 = vld [vmem:[#allocation12 + $0x18] sm:$0xff]
    %v1846 = vld [vmem:[%s12] sm:$0x1]
    %v1848 = vlaneseq
    %v1849 = vshrl.u32 %v1848, 7
    %v1850 = vsub.s32 0, %v1849
    %v1851 = vrot.slane %v1846, %v1850
    %v1854 = vsel %vm294, %v1839, 0
    %1856 = vmatprep.subr.mxu0 0.0
    %1857 = vmatpush1.msra.mxu0 %v1842
    %1858 = vmatprep.subr.mxu0 0.0
    %1859 = vmatpush1.msra.mxu0 %v1843
    %1860 = vmatprep.subr.mxu0 0.0
    %1861 = vmatpush1.msra.mxu0 %v1844
    %1862 = vmatprep.subr.mxu0 0.0
    %1863 = vmatpush1.msra.mxu0 %v1845
    %1864 = vmatprep.subr.mxu0 0.0
    %1865 = vmatpush1.msra.mxu0 0.0
    %1866 = vmatprep.subr.mxu0 0.0
    %1867 = vmatpush1.msra.mxu0 0.0
    %1868 = vmatprep.subr.mxu0 0.0
    %1869 = vmatpush1.msra.mxu0 0.0
    %1870 = vmatprep.subr.mxu0 0.0
    %1871 = vmatpush1.msra.mxu0 0.0
    %1872 = vmatprep.subr.mxu0 0.0
    %1873 = vmatpush1.msra.mxu0 0.0
    %1874 = vmatprep.subr.mxu0 0.0
    %1875 = vmatpush1.msra.mxu0 0.0
    %1876 = vmatprep.subr.mxu0 0.0
    %1877 = vmatpush1.msra.mxu0 0.0
    %1878 = vmatprep.subr.mxu0 0.0
    %1879 = vmatpush1.msra.mxu0 0.0
    %1880 = vmatprep.subr.mxu0 0.0
    %1881 = vmatpush1.msra.mxu0 0.0
    %1882 = vmatprep.subr.mxu0 0.0
    %1883 = vmatpush1.msra.mxu0 0.0
    %1884 = vmatprep.subr.mxu0 0.0
    %1885 = vmatpush1.msra.mxu0 0.0
    %1886 = vmatprep.subr.mxu0 0.0
    %1887 = vmatpush1.msra.mxu0 0.0
    %1888 = vmatprep.subr.mxu0 0.0
    %1889 = vmatpush1.msra.mxu0 0.0
    %1890 = vmatprep.subr.mxu0 0.0
    %1891 = vmatpush1.msra.mxu0 0.0
    %1892 = vmatprep.subr.mxu0 0.0
    %1893 = vmatpush1.msra.mxu0 0.0
    %1894 = vmatprep.subr.mxu0 0.0
    %1895 = vmatpush1.msra.mxu0 0.0
    %1896 = vmatprep.subr.mxu0 0.0
    %1897 = vmatpush1.msra.mxu0 0.0
    %1898 = vmatprep.subr.mxu0 0.0
    %1899 = vmatpush1.msra.mxu0 0.0
    %1900 = vmatprep.subr.mxu0 0.0
    %1901 = vmatpush1.msra.mxu0 0.0
    %1902 = vmatprep.subr.mxu0 0.0
    %1903 = vmatpush1.msra.mxu0 0.0
    %1904 = vmatprep.subr.mxu0 0.0
    %1905 = vmatpush1.msra.mxu0 0.0
    %1906 = vmatprep.subr.mxu0 0.0
    %1907 = vmatpush1.msra.mxu0 0.0
    %1908 = vmatprep.subr.mxu0 0.0
    %1909 = vmatpush1.msra.mxu0 0.0
    %1910 = vmatprep.subr.mxu0 0.0
    %1911 = vmatpush1.msra.mxu0 0.0
    %1912 = vmatprep.subr.mxu0 0.0
    %1913 = vmatpush1.msra.mxu0 0.0
    %1914 = vmatprep.subr.mxu0 0.0
    %1915 = vmatpush1.msra.mxu0 0.0
    %1916 = vmatprep.subr.mxu0 0.0
    %1917 = vmatpush1.msra.mxu0 0.0
    %1918 = vmatprep.subr.mxu0 0.0
    %1919 = vmatpush1.msra.mxu0 0.0
    %1920 = vmatprep.mubr.f32.mxu0 0.0
    %1921 = vmatmul.mubr.f32.gmra.mrb[0].mxu0 %v1854
    %v1922 = vpop.f32.mrb[0].mxu0
    %v1923 = vadd.f32 %v1851, %v1922
    %v1924 = vpop.f32.mrb[0].mxu0
    %1925 = vdwg.mxu0
    %1926 = vmax.xlane.f32.xlu0 %v1923
    %v1927 = vpop.xlane.xlu0 %1926
    %v1928 = vsub.f32 %v1923, %v1927
    %v1929 = vmul.f32 %v1928, 1.442695
    %v1930 = vpow.pop %v1929
    %1931 = vadd.xlane.f32.xlu0 %v1930
    %v1932 = vpop.xlane.xlu0 %1931
    %v1933 = vrcp.pop %v1932
    %v1934 = vmul.f32 %v1930, %v1933
    %1935 = vst [vmem:[#allocation14] sm:$0xff] %v1934
    // Predicated region
    $region86: #{tpu_custom_call.1} parent=1 // pred_check
      _
    $region87: #{tpu_custom_call.1} parent=1 // pred_check_branch
      %1937 = sbr.rel (0) target = $region89
    $region88: #{tpu_custom_call.1} parent=1 // pred_region
      %s1939 = ssub.s32 128, 128
      %1940 = vsyncadd [#allocation5], %s1939
      %s1942 = sshll.u32 [#allocation14], 4
      %s1943 = int_to_ptr.vmem [resolvable:$true] %s1942
      %1945 = dma.vmem_to_hbm [thread:$0]  %s1943, 128, %s15, [#allocation5]
    $region89: #{tpu_custom_call.1} parent=1 // pred_fallthru
      _
    // Predicated region
    $region90: #{tpu_custom_call.1} parent=1 // pred_check
      _
    $region91: #{tpu_custom_call.1} parent=1 // pred_check_branch
      %1947 = sbr.rel (0) target = $region93
    $region92: #{tpu_custom_call.1} parent=1 // pred_region
      %1948 = dma.done [#allocation5], 128
    $region93: #{tpu_custom_call.1} parent=1 // pred_fallthru
      _
    %1949 = vsyncpa [#allocation4], 1
    %1950 = vsyncpa [#allocation7], 1
    %1951 = vsyncpa [#allocation10], 1
    %1952 = vsyncpa [#allocation13], 1
    %1953 = vsyncpa [#allocation5], 1

</llo_original>
